<compile_context>
chip_gen: v7x
topology: tpu7x:2x2x1
jax: 0.10.0
libtpu: 0.0.40
codegen_flags: <defaults>
</compile_context>

<pallas_src>
import functools

import jax
import jax.numpy as jnp
from jax import lax
from jax.experimental import pallas as pl
from jax.experimental.pallas import tpu as pltpu


def _vat_kernel(x_ref, y_ref, d_ref, w_ref, b_ref, out_ref,
                *, xi, eps, num_power_iter):
    # x_ref/d_ref/out_ref: (C, P) VMEM   y_ref: (K, P) VMEM
    # w_ref: (K, C) SMEM (scalars)       b_ref: (K,) SMEM (scalars)
    C, _ = x_ref.shape
    K = y_ref.shape[0]

    def normalize_row(v):
        # Frobenius norm over spatial dims per (batch, channel): here the
        # spatial dim is the (lane-dense) last axis of each (1, P) row.
        nrm_sq = jnp.sum(v * v, axis=-1, keepdims=True)
        # tiny floor only guards the degenerate ||v||==0 case (would be NaN in
        # the PyTorch original anyway).
        return v * lax.rsqrt(jnp.maximum(nrm_sq, 1e-30))

    x_rows = [x_ref[c:c + 1, :] for c in range(C)]          # each (1, P)
    y_rows = [y_ref[k:k + 1, :] for k in range(K)]          # each (1, P)
    d_rows = [normalize_row(d_ref[c:c + 1, :]) for c in range(C)]

    # sum_k y[k] per pixel (needed for d/dz of KL(log_softmax(z), y))
    y_sum = y_rows[0]
    for k in range(1, K):
        y_sum = y_sum + y_rows[k]

    for _ in range(num_power_iter):
        xp_rows = [x_rows[c] + xi * d_rows[c] for c in range(C)]

        # model forward (1x1 conv == per-pixel linear layer), unrolled on the
        # VPU: z_k = bias[k] + sum_c W[k,c] * xp_c
        z_rows = []
        for k in range(K):
            acc = xp_rows[0] * w_ref[k, 0]
            for c in range(1, C):
                acc = acc + xp_rows[c] * w_ref[k, c]
            z_rows.append(acc + b_ref[k])

        # softmax over the class axis (rows), computed row-wise
        m = z_rows[0]
        for k in range(1, K):
            m = jnp.maximum(m, z_rows[k])
        e_rows = [jnp.exp(z_rows[k] - m) for k in range(K)]
        denom = e_rows[0]
        for k in range(1, K):
            denom = denom + e_rows[k]
        inv_denom = pl.reciprocal(denom, approx=True)

        # d/dz of KLDivLoss('batchmean')(log_softmax(z), y) is
        # (softmax(z)*sum_k y_k - y)/B ; the 1/B (and the xi chain factor
        # below) are dropped since they cancel under the re-normalization.
        g_rows = [e_rows[k] * inv_denom * y_sum - y_rows[k] for k in range(K)]

        # backward through the linear model: gd_c = sum_k W[k,c] * g_k
        new_d = []
        for c in range(C):
            acc = g_rows[0] * w_ref[0, c]
            for k in range(1, K):
                acc = acc + g_rows[k] * w_ref[k, c]
            new_d.append(normalize_row(acc))
        d_rows = new_d

    for c in range(C):
        out_ref[c:c + 1, :] = x_rows[c] + eps * d_rows[c]


def vat_pallas(x_nchw, y_nkhw, d_nchw, weight, bias, *, xi, eps, num_power_iter):
    B, C, H, W = x_nchw.shape
    K = y_nkhw.shape[1]
    P = H * W

    # NCHW kept; just flatten the spatial dims so P sits on the lane axis.
    x = x_nchw.reshape(B, C, P)
    y = y_nkhw.reshape(B, K, P)
    d = d_nchw.reshape(B, C, P)

    kernel = functools.partial(_vat_kernel, xi=xi, eps=eps,
                               num_power_iter=num_power_iter)

    # TODO(synk): for large H*W (esp. v7x: 64 MiB VMEM, 2 TCs) tile the spatial
    # axis (two-pass norm: accumulate then normalize) and parallelize over the
    # spatial-tile grid axis instead of the (small) batch axis.
    out = pl.pallas_call(
        kernel,
        out_shape=jax.ShapeDtypeStruct((B, C, P), jnp.float32),
        grid_spec=pltpu.PrefetchScalarGridSpec(
            num_scalar_prefetch=0,
            grid=(B,),
            in_specs=[
                pl.BlockSpec((None, C, P), lambda b: (b, 0, 0)),   # x  -> (C, P)
                pl.BlockSpec((None, K, P), lambda b: (b, 0, 0)),   # y  -> (K, P)
                pl.BlockSpec((None, C, P), lambda b: (b, 0, 0)),   # d  -> (C, P)
                pl.BlockSpec(memory_space=pltpu.MemorySpace.SMEM),  # W (K, C)
                pl.BlockSpec(memory_space=pltpu.MemorySpace.SMEM),  # bias (K,)
            ],
            out_specs=pl.BlockSpec((None, C, P), lambda b: (b, 0, 0)),
        ),
        compiler_params=pltpu.CompilerParams(dimension_semantics=("parallel",)),
    )(x, y, d, weight, bias)

    return out.reshape(B, C, H, W)


def _vat_reference(x, y, d, weight, bias, *, xi, eps, num_power_iter):
    """Pure-jnp NCHW reference with the same analytical gradient."""
    B = x.shape[0]

    def normalize(v):
        nrm = jnp.sqrt(jnp.sum(v * v, axis=(2, 3), keepdims=True))
        return v / jnp.maximum(nrm, 1e-15)

    d = normalize(d)
    for _ in range(num_power_iter):
        z = jnp.einsum('bchw,kc->bkhw', x + xi * d, weight) \
            + bias[None, :, None, None]
        p = jax.nn.softmax(z, axis=1)
        g = (p * jnp.sum(y, axis=1, keepdims=True) - y) / B
        gd = xi * jnp.einsum('bkhw,kc->bchw', g, weight)
        d = normalize(gd)
    return x + eps * d


if __name__ == "__main__":
    B, C_in, K, H, W = 2, 4, 4, 16, 16
    xi, eps, num_power_iter = 10.0, 1.0, 2

    key = jax.random.PRNGKey(0)
    kx, ky, kd, kw, kb = jax.random.split(key, 5)

    x = jax.random.normal(kx, (B, C_in, H, W), dtype=jnp.float32)
    # target y: per-pixel probability distribution over K classes (dim=1)
    y = jax.nn.softmax(jax.random.normal(ky, (B, K, H, W), dtype=jnp.float32), axis=1)
    # d: gaussian noise (torch.normal(zeros, ones)); normalized inside the kernel
    d = jax.random.normal(kd, (B, C_in, H, W), dtype=jnp.float32)
    # deterministic "model" parameters (1x1 conv)
    weight = 0.3 * jax.random.normal(kw, (K, C_in), dtype=jnp.float32)
    bias = 0.1 * jax.random.normal(kb, (K,), dtype=jnp.float32)

    x_adv = vat_pallas(x, y, d, weight, bias,
                       xi=xi, eps=eps, num_power_iter=num_power_iter)
    x_adv = jax.block_until_ready(x_adv)

    x_adv_ref = _vat_reference(x, y, d, weight, bias,
                               xi=xi, eps=eps, num_power_iter=num_power_iter)
    assert x_adv.shape == (B, C_in, H, W)
    # tolerance accounts for pl.reciprocal(approx=True) in the softmax denom
    assert jnp.allclose(x_adv, x_adv_ref, atol=2e-3, rtol=2e-3)

    print("KERNEL_OK")
</pallas_src>

<mosaic_0001>
module attributes {stable_mosaic.version = 11 : i64} {
  func.func @_vat_kernel(%arg0: i32, %arg1: memref<1x4x256xf32, #tpu.memory_space<vmem>>, %arg2: memref<1x4x256xf32, #tpu.memory_space<vmem>>, %arg3: memref<1x4x256xf32, #tpu.memory_space<vmem>>, %arg4: memref<4x4xf32, #tpu.memory_space<smem>>, %arg5: memref<4xf32, #tpu.memory_space<smem>>, %arg6: memref<1x4x256xf32, #tpu.memory_space<vmem>>) attributes {dimension_semantics = [#tpu.dimension_semantics<parallel>], iteration_bounds = array<i64: 2>, scalar_prefetch = 0 : i64, scratch_operands = 0 : i64, tpu.core_type = #tpu.core_type<tc>, window_params = [{transform_indices = @transform_0, window_bounds = array<i64: 1, 4, 256>}, {transform_indices = @transform_1, window_bounds = array<i64: 1, 4, 256>}, {transform_indices = @transform_2, window_bounds = array<i64: 1, 4, 256>}, {transform_indices = @transform_3, window_bounds = array<i64: 4, 4>}, {transform_indices = @transform_4, window_bounds = array<i64: 4>}, {transform_indices = @transform_5, window_bounds = array<i64: 1, 4, 256>}]} {
    %c0 = arith.constant 0 : index
    %c0_0 = arith.constant 0 : index
    %c0_1 = arith.constant 0 : index
    %0 = vector.load %arg1[%c0, %c0_0, %c0_1] : memref<1x4x256xf32, #tpu.memory_space<vmem>>, vector<1x1x256xf32>
    %1 = vector.shape_cast %0 : vector<1x1x256xf32> to vector<1x256xf32>
    %c0_2 = arith.constant 0 : index
    %c1 = arith.constant 1 : index
    %c0_3 = arith.constant 0 : index
    %2 = vector.load %arg1[%c0_2, %c1, %c0_3] : memref<1x4x256xf32, #tpu.memory_space<vmem>>, vector<1x1x256xf32>
    %3 = vector.shape_cast %2 : vector<1x1x256xf32> to vector<1x256xf32>
    %c0_4 = arith.constant 0 : index
    %c2 = arith.constant 2 : index
    %c0_5 = arith.constant 0 : index
    %4 = vector.load %arg1[%c0_4, %c2, %c0_5] : memref<1x4x256xf32, #tpu.memory_space<vmem>>, vector<1x1x256xf32>
    %5 = vector.shape_cast %4 : vector<1x1x256xf32> to vector<1x256xf32>
    %c0_6 = arith.constant 0 : index
    %c3 = arith.constant 3 : index
    %c0_7 = arith.constant 0 : index
    %6 = vector.load %arg1[%c0_6, %c3, %c0_7] : memref<1x4x256xf32, #tpu.memory_space<vmem>>, vector<1x1x256xf32>
    %7 = vector.shape_cast %6 : vector<1x1x256xf32> to vector<1x256xf32>
    %c0_8 = arith.constant 0 : index
    %c0_9 = arith.constant 0 : index
    %c0_10 = arith.constant 0 : index
    %8 = vector.load %arg2[%c0_8, %c0_9, %c0_10] : memref<1x4x256xf32, #tpu.memory_space<vmem>>, vector<1x1x256xf32>
    %9 = vector.shape_cast %8 : vector<1x1x256xf32> to vector<1x256xf32>
    %c0_11 = arith.constant 0 : index
    %c1_12 = arith.constant 1 : index
    %c0_13 = arith.constant 0 : index
    %10 = vector.load %arg2[%c0_11, %c1_12, %c0_13] : memref<1x4x256xf32, #tpu.memory_space<vmem>>, vector<1x1x256xf32>
    %11 = vector.shape_cast %10 : vector<1x1x256xf32> to vector<1x256xf32>
    %c0_14 = arith.constant 0 : index
    %c2_15 = arith.constant 2 : index
    %c0_16 = arith.constant 0 : index
    %12 = vector.load %arg2[%c0_14, %c2_15, %c0_16] : memref<1x4x256xf32, #tpu.memory_space<vmem>>, vector<1x1x256xf32>
    %13 = vector.shape_cast %12 : vector<1x1x256xf32> to vector<1x256xf32>
    %c0_17 = arith.constant 0 : index
    %c3_18 = arith.constant 3 : index
    %c0_19 = arith.constant 0 : index
    %14 = vector.load %arg2[%c0_17, %c3_18, %c0_19] : memref<1x4x256xf32, #tpu.memory_space<vmem>>, vector<1x1x256xf32>
    %15 = vector.shape_cast %14 : vector<1x1x256xf32> to vector<1x256xf32>
    %c0_20 = arith.constant 0 : index
    %c0_21 = arith.constant 0 : index
    %c0_22 = arith.constant 0 : index
    %16 = vector.load %arg3[%c0_20, %c0_21, %c0_22] : memref<1x4x256xf32, #tpu.memory_space<vmem>>, vector<1x1x256xf32>
    %17 = vector.shape_cast %16 : vector<1x1x256xf32> to vector<1x256xf32>
    %18 = arith.mulf %17, %17 : vector<1x256xf32>
    %cst = arith.constant dense<0.000000e+00> : vector<1xf32>
    %19 = vector.multi_reduction <add>, %18, %cst [1] : vector<1x256xf32> to vector<1xf32>
    %20 = vector.shape_cast %19 : vector<1xf32> to vector<1x1xf32>
    %cst_23 = arith.constant 1.000000e-30 : f32
    %21 = vector.broadcast %cst_23 : f32 to vector<1x1xf32>
    %22 = arith.maximumf %20, %21 : vector<1x1xf32>
    %23 = math.rsqrt %22 : vector<1x1xf32>
    %24 = vector.broadcast %23 : vector<1x1xf32> to vector<1x256xf32>
    %25 = arith.mulf %17, %24 : vector<1x256xf32>
    %c0_24 = arith.constant 0 : index
    %c1_25 = arith.constant 1 : index
    %c0_26 = arith.constant 0 : index
    %26 = vector.load %arg3[%c0_24, %c1_25, %c0_26] : memref<1x4x256xf32, #tpu.memory_space<vmem>>, vector<1x1x256xf32>
    %27 = vector.shape_cast %26 : vector<1x1x256xf32> to vector<1x256xf32>
    %28 = arith.mulf %27, %27 : vector<1x256xf32>
    %cst_27 = arith.constant dense<0.000000e+00> : vector<1xf32>
    %29 = vector.multi_reduction <add>, %28, %cst_27 [1] : vector<1x256xf32> to vector<1xf32>
    %30 = vector.shape_cast %29 : vector<1xf32> to vector<1x1xf32>
    %cst_28 = arith.constant 1.000000e-30 : f32
    %31 = vector.broadcast %cst_28 : f32 to vector<1x1xf32>
    %32 = arith.maximumf %30, %31 : vector<1x1xf32>
    %33 = math.rsqrt %32 : vector<1x1xf32>
    %34 = vector.broadcast %33 : vector<1x1xf32> to vector<1x256xf32>
    %35 = arith.mulf %27, %34 : vector<1x256xf32>
    %c0_29 = arith.constant 0 : index
    %c2_30 = arith.constant 2 : index
    %c0_31 = arith.constant 0 : index
    %36 = vector.load %arg3[%c0_29, %c2_30, %c0_31] : memref<1x4x256xf32, #tpu.memory_space<vmem>>, vector<1x1x256xf32>
    %37 = vector.shape_cast %36 : vector<1x1x256xf32> to vector<1x256xf32>
    %38 = arith.mulf %37, %37 : vector<1x256xf32>
    %cst_32 = arith.constant dense<0.000000e+00> : vector<1xf32>
    %39 = vector.multi_reduction <add>, %38, %cst_32 [1] : vector<1x256xf32> to vector<1xf32>
    %40 = vector.shape_cast %39 : vector<1xf32> to vector<1x1xf32>
    %cst_33 = arith.constant 1.000000e-30 : f32
    %41 = vector.broadcast %cst_33 : f32 to vector<1x1xf32>
    %42 = arith.maximumf %40, %41 : vector<1x1xf32>
    %43 = math.rsqrt %42 : vector<1x1xf32>
    %44 = vector.broadcast %43 : vector<1x1xf32> to vector<1x256xf32>
    %45 = arith.mulf %37, %44 : vector<1x256xf32>
    %c0_34 = arith.constant 0 : index
    %c3_35 = arith.constant 3 : index
    %c0_36 = arith.constant 0 : index
    %46 = vector.load %arg3[%c0_34, %c3_35, %c0_36] : memref<1x4x256xf32, #tpu.memory_space<vmem>>, vector<1x1x256xf32>
    %47 = vector.shape_cast %46 : vector<1x1x256xf32> to vector<1x256xf32>
    %48 = arith.mulf %47, %47 : vector<1x256xf32>
    %cst_37 = arith.constant dense<0.000000e+00> : vector<1xf32>
    %49 = vector.multi_reduction <add>, %48, %cst_37 [1] : vector<1x256xf32> to vector<1xf32>
    %50 = vector.shape_cast %49 : vector<1xf32> to vector<1x1xf32>
    %cst_38 = arith.constant 1.000000e-30 : f32
    %51 = vector.broadcast %cst_38 : f32 to vector<1x1xf32>
    %52 = arith.maximumf %50, %51 : vector<1x1xf32>
    %53 = math.rsqrt %52 : vector<1x1xf32>
    %54 = vector.broadcast %53 : vector<1x1xf32> to vector<1x256xf32>
    %55 = arith.mulf %47, %54 : vector<1x256xf32>
    %56 = arith.addf %9, %11 : vector<1x256xf32>
    %57 = arith.addf %56, %13 : vector<1x256xf32>
    %58 = arith.addf %57, %15 : vector<1x256xf32>
    %cst_39 = arith.constant 1.000000e+01 : f32
    %59 = vector.broadcast %cst_39 : f32 to vector<1x256xf32>
    %60 = arith.mulf %59, %25 : vector<1x256xf32>
    %61 = arith.addf %1, %60 : vector<1x256xf32>
    %cst_40 = arith.constant 1.000000e+01 : f32
    %62 = vector.broadcast %cst_40 : f32 to vector<1x256xf32>
    %63 = arith.mulf %62, %35 : vector<1x256xf32>
    %64 = arith.addf %3, %63 : vector<1x256xf32>
    %cst_41 = arith.constant 1.000000e+01 : f32
    %65 = vector.broadcast %cst_41 : f32 to vector<1x256xf32>
    %66 = arith.mulf %65, %45 : vector<1x256xf32>
    %67 = arith.addf %5, %66 : vector<1x256xf32>
    %cst_42 = arith.constant 1.000000e+01 : f32
    %68 = vector.broadcast %cst_42 : f32 to vector<1x256xf32>
    %69 = arith.mulf %68, %55 : vector<1x256xf32>
    %70 = arith.addf %7, %69 : vector<1x256xf32>
    %c0_43 = arith.constant 0 : index
    %c0_44 = arith.constant 0 : index
    %71 = memref.load %arg4[%c0_43, %c0_44] : memref<4x4xf32, #tpu.memory_space<smem>>
    %72 = vector.broadcast %71 : f32 to vector<1x256xf32>
    %73 = arith.mulf %61, %72 : vector<1x256xf32>
    %c0_45 = arith.constant 0 : index
    %c1_46 = arith.constant 1 : index
    %74 = memref.load %arg4[%c0_45, %c1_46] : memref<4x4xf32, #tpu.memory_space<smem>>
    %75 = vector.broadcast %74 : f32 to vector<1x256xf32>
    %76 = arith.mulf %64, %75 : vector<1x256xf32>
    %77 = arith.addf %73, %76 : vector<1x256xf32>
    %c0_47 = arith.constant 0 : index
    %c2_48 = arith.constant 2 : index
    %78 = memref.load %arg4[%c0_47, %c2_48] : memref<4x4xf32, #tpu.memory_space<smem>>
    %79 = vector.broadcast %78 : f32 to vector<1x256xf32>
    %80 = arith.mulf %67, %79 : vector<1x256xf32>
    %81 = arith.addf %77, %80 : vector<1x256xf32>
    %c0_49 = arith.constant 0 : index
    %c3_50 = arith.constant 3 : index
    %82 = memref.load %arg4[%c0_49, %c3_50] : memref<4x4xf32, #tpu.memory_space<smem>>
    %83 = vector.broadcast %82 : f32 to vector<1x256xf32>
    %84 = arith.mulf %70, %83 : vector<1x256xf32>
    %85 = arith.addf %81, %84 : vector<1x256xf32>
    %c0_51 = arith.constant 0 : index
    %86 = memref.load %arg5[%c0_51] : memref<4xf32, #tpu.memory_space<smem>>
    %87 = vector.broadcast %86 : f32 to vector<1x256xf32>
    %88 = arith.addf %85, %87 : vector<1x256xf32>
    %c1_52 = arith.constant 1 : index
    %c0_53 = arith.constant 0 : index
    %89 = memref.load %arg4[%c1_52, %c0_53] : memref<4x4xf32, #tpu.memory_space<smem>>
    %90 = vector.broadcast %89 : f32 to vector<1x256xf32>
    %91 = arith.mulf %61, %90 : vector<1x256xf32>
    %c1_54 = arith.constant 1 : index
    %c1_55 = arith.constant 1 : index
    %92 = memref.load %arg4[%c1_54, %c1_55] : memref<4x4xf32, #tpu.memory_space<smem>>
    %93 = vector.broadcast %92 : f32 to vector<1x256xf32>
    %94 = arith.mulf %64, %93 : vector<1x256xf32>
    %95 = arith.addf %91, %94 : vector<1x256xf32>
    %c1_56 = arith.constant 1 : index
    %c2_57 = arith.constant 2 : index
    %96 = memref.load %arg4[%c1_56, %c2_57] : memref<4x4xf32, #tpu.memory_space<smem>>
    %97 = vector.broadcast %96 : f32 to vector<1x256xf32>
    %98 = arith.mulf %67, %97 : vector<1x256xf32>
    %99 = arith.addf %95, %98 : vector<1x256xf32>
    %c1_58 = arith.constant 1 : index
    %c3_59 = arith.constant 3 : index
    %100 = memref.load %arg4[%c1_58, %c3_59] : memref<4x4xf32, #tpu.memory_space<smem>>
    %101 = vector.broadcast %100 : f32 to vector<1x256xf32>
    %102 = arith.mulf %70, %101 : vector<1x256xf32>
    %103 = arith.addf %99, %102 : vector<1x256xf32>
    %c1_60 = arith.constant 1 : index
    %104 = memref.load %arg5[%c1_60] : memref<4xf32, #tpu.memory_space<smem>>
    %105 = vector.broadcast %104 : f32 to vector<1x256xf32>
    %106 = arith.addf %103, %105 : vector<1x256xf32>
    %c2_61 = arith.constant 2 : index
    %c0_62 = arith.constant 0 : index
    %107 = memref.load %arg4[%c2_61, %c0_62] : memref<4x4xf32, #tpu.memory_space<smem>>
    %108 = vector.broadcast %107 : f32 to vector<1x256xf32>
    %109 = arith.mulf %61, %108 : vector<1x256xf32>
    %c2_63 = arith.constant 2 : index
    %c1_64 = arith.constant 1 : index
    %110 = memref.load %arg4[%c2_63, %c1_64] : memref<4x4xf32, #tpu.memory_space<smem>>
    %111 = vector.broadcast %110 : f32 to vector<1x256xf32>
    %112 = arith.mulf %64, %111 : vector<1x256xf32>
    %113 = arith.addf %109, %112 : vector<1x256xf32>
    %c2_65 = arith.constant 2 : index
    %c2_66 = arith.constant 2 : index
    %114 = memref.load %arg4[%c2_65, %c2_66] : memref<4x4xf32, #tpu.memory_space<smem>>
    %115 = vector.broadcast %114 : f32 to vector<1x256xf32>
    %116 = arith.mulf %67, %115 : vector<1x256xf32>
    %117 = arith.addf %113, %116 : vector<1x256xf32>
    %c2_67 = arith.constant 2 : index
    %c3_68 = arith.constant 3 : index
    %118 = memref.load %arg4[%c2_67, %c3_68] : memref<4x4xf32, #tpu.memory_space<smem>>
    %119 = vector.broadcast %118 : f32 to vector<1x256xf32>
    %120 = arith.mulf %70, %119 : vector<1x256xf32>
    %121 = arith.addf %117, %120 : vector<1x256xf32>
    %c2_69 = arith.constant 2 : index
    %122 = memref.load %arg5[%c2_69] : memref<4xf32, #tpu.memory_space<smem>>
    %123 = vector.broadcast %122 : f32 to vector<1x256xf32>
    %124 = arith.addf %121, %123 : vector<1x256xf32>
    %c3_70 = arith.constant 3 : index
    %c0_71 = arith.constant 0 : index
    %125 = memref.load %arg4[%c3_70, %c0_71] : memref<4x4xf32, #tpu.memory_space<smem>>
    %126 = vector.broadcast %125 : f32 to vector<1x256xf32>
    %127 = arith.mulf %61, %126 : vector<1x256xf32>
    %c3_72 = arith.constant 3 : index
    %c1_73 = arith.constant 1 : index
    %128 = memref.load %arg4[%c3_72, %c1_73] : memref<4x4xf32, #tpu.memory_space<smem>>
    %129 = vector.broadcast %128 : f32 to vector<1x256xf32>
    %130 = arith.mulf %64, %129 : vector<1x256xf32>
    %131 = arith.addf %127, %130 : vector<1x256xf32>
    %c3_74 = arith.constant 3 : index
    %c2_75 = arith.constant 2 : index
    %132 = memref.load %arg4[%c3_74, %c2_75] : memref<4x4xf32, #tpu.memory_space<smem>>
    %133 = vector.broadcast %132 : f32 to vector<1x256xf32>
    %134 = arith.mulf %67, %133 : vector<1x256xf32>
    %135 = arith.addf %131, %134 : vector<1x256xf32>
    %c3_76 = arith.constant 3 : index
    %c3_77 = arith.constant 3 : index
    %136 = memref.load %arg4[%c3_76, %c3_77] : memref<4x4xf32, #tpu.memory_space<smem>>
    %137 = vector.broadcast %136 : f32 to vector<1x256xf32>
    %138 = arith.mulf %70, %137 : vector<1x256xf32>
    %139 = arith.addf %135, %138 : vector<1x256xf32>
    %c3_78 = arith.constant 3 : index
    %140 = memref.load %arg5[%c3_78] : memref<4xf32, #tpu.memory_space<smem>>
    %141 = vector.broadcast %140 : f32 to vector<1x256xf32>
    %142 = arith.addf %139, %141 : vector<1x256xf32>
    %143 = arith.maximumf %88, %106 : vector<1x256xf32>
    %144 = arith.maximumf %143, %124 : vector<1x256xf32>
    %145 = arith.maximumf %144, %142 : vector<1x256xf32>
    %146 = arith.subf %88, %145 : vector<1x256xf32>
    %147 = math.exp %146 : vector<1x256xf32>
    %148 = arith.subf %106, %145 : vector<1x256xf32>
    %149 = math.exp %148 : vector<1x256xf32>
    %150 = arith.subf %124, %145 : vector<1x256xf32>
    %151 = math.exp %150 : vector<1x256xf32>
    %152 = arith.subf %142, %145 : vector<1x256xf32>
    %153 = math.exp %152 : vector<1x256xf32>
    %154 = arith.addf %147, %149 : vector<1x256xf32>
    %155 = arith.addf %154, %151 : vector<1x256xf32>
    %156 = arith.addf %155, %153 : vector<1x256xf32>
    %157 = tpu.reciprocal %156 {approx = true} : vector<1x256xf32> -> vector<1x256xf32>
    %158 = arith.mulf %147, %157 : vector<1x256xf32>
    %159 = arith.mulf %158, %58 : vector<1x256xf32>
    %160 = arith.subf %159, %9 : vector<1x256xf32>
    %161 = arith.mulf %149, %157 : vector<1x256xf32>
    %162 = arith.mulf %161, %58 : vector<1x256xf32>
    %163 = arith.subf %162, %11 : vector<1x256xf32>
    %164 = arith.mulf %151, %157 : vector<1x256xf32>
    %165 = arith.mulf %164, %58 : vector<1x256xf32>
    %166 = arith.subf %165, %13 : vector<1x256xf32>
    %167 = arith.mulf %153, %157 : vector<1x256xf32>
    %168 = arith.mulf %167, %58 : vector<1x256xf32>
    %169 = arith.subf %168, %15 : vector<1x256xf32>
    %c0_79 = arith.constant 0 : index
    %c0_80 = arith.constant 0 : index
    %170 = memref.load %arg4[%c0_79, %c0_80] : memref<4x4xf32, #tpu.memory_space<smem>>
    %171 = vector.broadcast %170 : f32 to vector<1x256xf32>
    %172 = arith.mulf %160, %171 : vector<1x256xf32>
    %c1_81 = arith.constant 1 : index
    %c0_82 = arith.constant 0 : index
    %173 = memref.load %arg4[%c1_81, %c0_82] : memref<4x4xf32, #tpu.memory_space<smem>>
    %174 = vector.broadcast %173 : f32 to vector<1x256xf32>
    %175 = arith.mulf %163, %174 : vector<1x256xf32>
    %176 = arith.addf %172, %175 : vector<1x256xf32>
    %c2_83 = arith.constant 2 : index
    %c0_84 = arith.constant 0 : index
    %177 = memref.load %arg4[%c2_83, %c0_84] : memref<4x4xf32, #tpu.memory_space<smem>>
    %178 = vector.broadcast %177 : f32 to vector<1x256xf32>
    %179 = arith.mulf %166, %178 : vector<1x256xf32>
    %180 = arith.addf %176, %179 : vector<1x256xf32>
    %c3_85 = arith.constant 3 : index
    %c0_86 = arith.constant 0 : index
    %181 = memref.load %arg4[%c3_85, %c0_86] : memref<4x4xf32, #tpu.memory_space<smem>>
    %182 = vector.broadcast %181 : f32 to vector<1x256xf32>
    %183 = arith.mulf %169, %182 : vector<1x256xf32>
    %184 = arith.addf %180, %183 : vector<1x256xf32>
    %185 = arith.mulf %184, %184 : vector<1x256xf32>
    %cst_87 = arith.constant dense<0.000000e+00> : vector<1xf32>
    %186 = vector.multi_reduction <add>, %185, %cst_87 [1] : vector<1x256xf32> to vector<1xf32>
    %187 = vector.shape_cast %186 : vector<1xf32> to vector<1x1xf32>
    %cst_88 = arith.constant 1.000000e-30 : f32
    %188 = vector.broadcast %cst_88 : f32 to vector<1x1xf32>
    %189 = arith.maximumf %187, %188 : vector<1x1xf32>
    %190 = math.rsqrt %189 : vector<1x1xf32>
    %191 = vector.broadcast %190 : vector<1x1xf32> to vector<1x256xf32>
    %192 = arith.mulf %184, %191 : vector<1x256xf32>
    %c0_89 = arith.constant 0 : index
    %c1_90 = arith.constant 1 : index
    %193 = memref.load %arg4[%c0_89, %c1_90] : memref<4x4xf32, #tpu.memory_space<smem>>
    %194 = vector.broadcast %193 : f32 to vector<1x256xf32>
    %195 = arith.mulf %160, %194 : vector<1x256xf32>
    %c1_91 = arith.constant 1 : index
    %c1_92 = arith.constant 1 : index
    %196 = memref.load %arg4[%c1_91, %c1_92] : memref<4x4xf32, #tpu.memory_space<smem>>
    %197 = vector.broadcast %196 : f32 to vector<1x256xf32>
    %198 = arith.mulf %163, %197 : vector<1x256xf32>
    %199 = arith.addf %195, %198 : vector<1x256xf32>
    %c2_93 = arith.constant 2 : index
    %c1_94 = arith.constant 1 : index
    %200 = memref.load %arg4[%c2_93, %c1_94] : memref<4x4xf32, #tpu.memory_space<smem>>
    %201 = vector.broadcast %200 : f32 to vector<1x256xf32>
    %202 = arith.mulf %166, %201 : vector<1x256xf32>
    %203 = arith.addf %199, %202 : vector<1x256xf32>
    %c3_95 = arith.constant 3 : index
    %c1_96 = arith.constant 1 : index
    %204 = memref.load %arg4[%c3_95, %c1_96] : memref<4x4xf32, #tpu.memory_space<smem>>
    %205 = vector.broadcast %204 : f32 to vector<1x256xf32>
    %206 = arith.mulf %169, %205 : vector<1x256xf32>
    %207 = arith.addf %203, %206 : vector<1x256xf32>
    %208 = arith.mulf %207, %207 : vector<1x256xf32>
    %cst_97 = arith.constant dense<0.000000e+00> : vector<1xf32>
    %209 = vector.multi_reduction <add>, %208, %cst_97 [1] : vector<1x256xf32> to vector<1xf32>
    %210 = vector.shape_cast %209 : vector<1xf32> to vector<1x1xf32>
    %cst_98 = arith.constant 1.000000e-30 : f32
    %211 = vector.broadcast %cst_98 : f32 to vector<1x1xf32>
    %212 = arith.maximumf %210, %211 : vector<1x1xf32>
    %213 = math.rsqrt %212 : vector<1x1xf32>
    %214 = vector.broadcast %213 : vector<1x1xf32> to vector<1x256xf32>
    %215 = arith.mulf %207, %214 : vector<1x256xf32>
    %c0_99 = arith.constant 0 : index
    %c2_100 = arith.constant 2 : index
    %216 = memref.load %arg4[%c0_99, %c2_100] : memref<4x4xf32, #tpu.memory_space<smem>>
    %217 = vector.broadcast %216 : f32 to vector<1x256xf32>
    %218 = arith.mulf %160, %217 : vector<1x256xf32>
    %c1_101 = arith.constant 1 : index
    %c2_102 = arith.constant 2 : index
    %219 = memref.load %arg4[%c1_101, %c2_102] : memref<4x4xf32, #tpu.memory_space<smem>>
    %220 = vector.broadcast %219 : f32 to vector<1x256xf32>
    %221 = arith.mulf %163, %220 : vector<1x256xf32>
    %222 = arith.addf %218, %221 : vector<1x256xf32>
    %c2_103 = arith.constant 2 : index
    %c2_104 = arith.constant 2 : index
    %223 = memref.load %arg4[%c2_103, %c2_104] : memref<4x4xf32, #tpu.memory_space<smem>>
    %224 = vector.broadcast %223 : f32 to vector<1x256xf32>
    %225 = arith.mulf %166, %224 : vector<1x256xf32>
    %226 = arith.addf %222, %225 : vector<1x256xf32>
    %c3_105 = arith.constant 3 : index
    %c2_106 = arith.constant 2 : index
    %227 = memref.load %arg4[%c3_105, %c2_106] : memref<4x4xf32, #tpu.memory_space<smem>>
    %228 = vector.broadcast %227 : f32 to vector<1x256xf32>
    %229 = arith.mulf %169, %228 : vector<1x256xf32>
    %230 = arith.addf %226, %229 : vector<1x256xf32>
    %231 = arith.mulf %230, %230 : vector<1x256xf32>
    %cst_107 = arith.constant dense<0.000000e+00> : vector<1xf32>
    %232 = vector.multi_reduction <add>, %231, %cst_107 [1] : vector<1x256xf32> to vector<1xf32>
    %233 = vector.shape_cast %232 : vector<1xf32> to vector<1x1xf32>
    %cst_108 = arith.constant 1.000000e-30 : f32
    %234 = vector.broadcast %cst_108 : f32 to vector<1x1xf32>
    %235 = arith.maximumf %233, %234 : vector<1x1xf32>
    %236 = math.rsqrt %235 : vector<1x1xf32>
    %237 = vector.broadcast %236 : vector<1x1xf32> to vector<1x256xf32>
    %238 = arith.mulf %230, %237 : vector<1x256xf32>
    %c0_109 = arith.constant 0 : index
    %c3_110 = arith.constant 3 : index
    %239 = memref.load %arg4[%c0_109, %c3_110] : memref<4x4xf32, #tpu.memory_space<smem>>
    %240 = vector.broadcast %239 : f32 to vector<1x256xf32>
    %241 = arith.mulf %160, %240 : vector<1x256xf32>
    %c1_111 = arith.constant 1 : index
    %c3_112 = arith.constant 3 : index
    %242 = memref.load %arg4[%c1_111, %c3_112] : memref<4x4xf32, #tpu.memory_space<smem>>
    %243 = vector.broadcast %242 : f32 to vector<1x256xf32>
    %244 = arith.mulf %163, %243 : vector<1x256xf32>
    %245 = arith.addf %241, %244 : vector<1x256xf32>
    %c2_113 = arith.constant 2 : index
    %c3_114 = arith.constant 3 : index
    %246 = memref.load %arg4[%c2_113, %c3_114] : memref<4x4xf32, #tpu.memory_space<smem>>
    %247 = vector.broadcast %246 : f32 to vector<1x256xf32>
    %248 = arith.mulf %166, %247 : vector<1x256xf32>
    %249 = arith.addf %245, %248 : vector<1x256xf32>
    %c3_115 = arith.constant 3 : index
    %c3_116 = arith.constant 3 : index
    %250 = memref.load %arg4[%c3_115, %c3_116] : memref<4x4xf32, #tpu.memory_space<smem>>
    %251 = vector.broadcast %250 : f32 to vector<1x256xf32>
    %252 = arith.mulf %169, %251 : vector<1x256xf32>
    %253 = arith.addf %249, %252 : vector<1x256xf32>
    %254 = arith.mulf %253, %253 : vector<1x256xf32>
    %cst_117 = arith.constant dense<0.000000e+00> : vector<1xf32>
    %255 = vector.multi_reduction <add>, %254, %cst_117 [1] : vector<1x256xf32> to vector<1xf32>
    %256 = vector.shape_cast %255 : vector<1xf32> to vector<1x1xf32>
    %cst_118 = arith.constant 1.000000e-30 : f32
    %257 = vector.broadcast %cst_118 : f32 to vector<1x1xf32>
    %258 = arith.maximumf %256, %257 : vector<1x1xf32>
    %259 = math.rsqrt %258 : vector<1x1xf32>
    %260 = vector.broadcast %259 : vector<1x1xf32> to vector<1x256xf32>
    %261 = arith.mulf %253, %260 : vector<1x256xf32>
    %cst_119 = arith.constant 1.000000e+01 : f32
    %262 = vector.broadcast %cst_119 : f32 to vector<1x256xf32>
    %263 = arith.mulf %262, %192 : vector<1x256xf32>
    %264 = arith.addf %1, %263 : vector<1x256xf32>
    %cst_120 = arith.constant 1.000000e+01 : f32
    %265 = vector.broadcast %cst_120 : f32 to vector<1x256xf32>
    %266 = arith.mulf %265, %215 : vector<1x256xf32>
    %267 = arith.addf %3, %266 : vector<1x256xf32>
    %cst_121 = arith.constant 1.000000e+01 : f32
    %268 = vector.broadcast %cst_121 : f32 to vector<1x256xf32>
    %269 = arith.mulf %268, %238 : vector<1x256xf32>
    %270 = arith.addf %5, %269 : vector<1x256xf32>
    %cst_122 = arith.constant 1.000000e+01 : f32
    %271 = vector.broadcast %cst_122 : f32 to vector<1x256xf32>
    %272 = arith.mulf %271, %261 : vector<1x256xf32>
    %273 = arith.addf %7, %272 : vector<1x256xf32>
    %c0_123 = arith.constant 0 : index
    %c0_124 = arith.constant 0 : index
    %274 = memref.load %arg4[%c0_123, %c0_124] : memref<4x4xf32, #tpu.memory_space<smem>>
    %275 = vector.broadcast %274 : f32 to vector<1x256xf32>
    %276 = arith.mulf %264, %275 : vector<1x256xf32>
    %c0_125 = arith.constant 0 : index
    %c1_126 = arith.constant 1 : index
    %277 = memref.load %arg4[%c0_125, %c1_126] : memref<4x4xf32, #tpu.memory_space<smem>>
    %278 = vector.broadcast %277 : f32 to vector<1x256xf32>
    %279 = arith.mulf %267, %278 : vector<1x256xf32>
    %280 = arith.addf %276, %279 : vector<1x256xf32>
    %c0_127 = arith.constant 0 : index
    %c2_128 = arith.constant 2 : index
    %281 = memref.load %arg4[%c0_127, %c2_128] : memref<4x4xf32, #tpu.memory_space<smem>>
    %282 = vector.broadcast %281 : f32 to vector<1x256xf32>
    %283 = arith.mulf %270, %282 : vector<1x256xf32>
    %284 = arith.addf %280, %283 : vector<1x256xf32>
    %c0_129 = arith.constant 0 : index
    %c3_130 = arith.constant 3 : index
    %285 = memref.load %arg4[%c0_129, %c3_130] : memref<4x4xf32, #tpu.memory_space<smem>>
    %286 = vector.broadcast %285 : f32 to vector<1x256xf32>
    %287 = arith.mulf %273, %286 : vector<1x256xf32>
    %288 = arith.addf %284, %287 : vector<1x256xf32>
    %c0_131 = arith.constant 0 : index
    %289 = memref.load %arg5[%c0_131] : memref<4xf32, #tpu.memory_space<smem>>
    %290 = vector.broadcast %289 : f32 to vector<1x256xf32>
    %291 = arith.addf %288, %290 : vector<1x256xf32>
    %c1_132 = arith.constant 1 : index
    %c0_133 = arith.constant 0 : index
    %292 = memref.load %arg4[%c1_132, %c0_133] : memref<4x4xf32, #tpu.memory_space<smem>>
    %293 = vector.broadcast %292 : f32 to vector<1x256xf32>
    %294 = arith.mulf %264, %293 : vector<1x256xf32>
    %c1_134 = arith.constant 1 : index
    %c1_135 = arith.constant 1 : index
    %295 = memref.load %arg4[%c1_134, %c1_135] : memref<4x4xf32, #tpu.memory_space<smem>>
    %296 = vector.broadcast %295 : f32 to vector<1x256xf32>
    %297 = arith.mulf %267, %296 : vector<1x256xf32>
    %298 = arith.addf %294, %297 : vector<1x256xf32>
    %c1_136 = arith.constant 1 : index
    %c2_137 = arith.constant 2 : index
    %299 = memref.load %arg4[%c1_136, %c2_137] : memref<4x4xf32, #tpu.memory_space<smem>>
    %300 = vector.broadcast %299 : f32 to vector<1x256xf32>
    %301 = arith.mulf %270, %300 : vector<1x256xf32>
    %302 = arith.addf %298, %301 : vector<1x256xf32>
    %c1_138 = arith.constant 1 : index
    %c3_139 = arith.constant 3 : index
    %303 = memref.load %arg4[%c1_138, %c3_139] : memref<4x4xf32, #tpu.memory_space<smem>>
    %304 = vector.broadcast %303 : f32 to vector<1x256xf32>
    %305 = arith.mulf %273, %304 : vector<1x256xf32>
    %306 = arith.addf %302, %305 : vector<1x256xf32>
    %c1_140 = arith.constant 1 : index
    %307 = memref.load %arg5[%c1_140] : memref<4xf32, #tpu.memory_space<smem>>
    %308 = vector.broadcast %307 : f32 to vector<1x256xf32>
    %309 = arith.addf %306, %308 : vector<1x256xf32>
    %c2_141 = arith.constant 2 : index
    %c0_142 = arith.constant 0 : index
    %310 = memref.load %arg4[%c2_141, %c0_142] : memref<4x4xf32, #tpu.memory_space<smem>>
    %311 = vector.broadcast %310 : f32 to vector<1x256xf32>
    %312 = arith.mulf %264, %311 : vector<1x256xf32>
    %c2_143 = arith.constant 2 : index
    %c1_144 = arith.constant 1 : index
    %313 = memref.load %arg4[%c2_143, %c1_144] : memref<4x4xf32, #tpu.memory_space<smem>>
    %314 = vector.broadcast %313 : f32 to vector<1x256xf32>
    %315 = arith.mulf %267, %314 : vector<1x256xf32>
    %316 = arith.addf %312, %315 : vector<1x256xf32>
    %c2_145 = arith.constant 2 : index
    %c2_146 = arith.constant 2 : index
    %317 = memref.load %arg4[%c2_145, %c2_146] : memref<4x4xf32, #tpu.memory_space<smem>>
    %318 = vector.broadcast %317 : f32 to vector<1x256xf32>
    %319 = arith.mulf %270, %318 : vector<1x256xf32>
    %320 = arith.addf %316, %319 : vector<1x256xf32>
    %c2_147 = arith.constant 2 : index
    %c3_148 = arith.constant 3 : index
    %321 = memref.load %arg4[%c2_147, %c3_148] : memref<4x4xf32, #tpu.memory_space<smem>>
    %322 = vector.broadcast %321 : f32 to vector<1x256xf32>
    %323 = arith.mulf %273, %322 : vector<1x256xf32>
    %324 = arith.addf %320, %323 : vector<1x256xf32>
    %c2_149 = arith.constant 2 : index
    %325 = memref.load %arg5[%c2_149] : memref<4xf32, #tpu.memory_space<smem>>
    %326 = vector.broadcast %325 : f32 to vector<1x256xf32>
    %327 = arith.addf %324, %326 : vector<1x256xf32>
    %c3_150 = arith.constant 3 : index
    %c0_151 = arith.constant 0 : index
    %328 = memref.load %arg4[%c3_150, %c0_151] : memref<4x4xf32, #tpu.memory_space<smem>>
    %329 = vector.broadcast %328 : f32 to vector<1x256xf32>
    %330 = arith.mulf %264, %329 : vector<1x256xf32>
    %c3_152 = arith.constant 3 : index
    %c1_153 = arith.constant 1 : index
    %331 = memref.load %arg4[%c3_152, %c1_153] : memref<4x4xf32, #tpu.memory_space<smem>>
    %332 = vector.broadcast %331 : f32 to vector<1x256xf32>
    %333 = arith.mulf %267, %332 : vector<1x256xf32>
    %334 = arith.addf %330, %333 : vector<1x256xf32>
    %c3_154 = arith.constant 3 : index
    %c2_155 = arith.constant 2 : index
    %335 = memref.load %arg4[%c3_154, %c2_155] : memref<4x4xf32, #tpu.memory_space<smem>>
    %336 = vector.broadcast %335 : f32 to vector<1x256xf32>
    %337 = arith.mulf %270, %336 : vector<1x256xf32>
    %338 = arith.addf %334, %337 : vector<1x256xf32>
    %c3_156 = arith.constant 3 : index
    %c3_157 = arith.constant 3 : index
    %339 = memref.load %arg4[%c3_156, %c3_157] : memref<4x4xf32, #tpu.memory_space<smem>>
    %340 = vector.broadcast %339 : f32 to vector<1x256xf32>
    %341 = arith.mulf %273, %340 : vector<1x256xf32>
    %342 = arith.addf %338, %341 : vector<1x256xf32>
    %c3_158 = arith.constant 3 : index
    %343 = memref.load %arg5[%c3_158] : memref<4xf32, #tpu.memory_space<smem>>
    %344 = vector.broadcast %343 : f32 to vector<1x256xf32>
    %345 = arith.addf %342, %344 : vector<1x256xf32>
    %346 = arith.maximumf %291, %309 : vector<1x256xf32>
    %347 = arith.maximumf %346, %327 : vector<1x256xf32>
    %348 = arith.maximumf %347, %345 : vector<1x256xf32>
    %349 = arith.subf %291, %348 : vector<1x256xf32>
    %350 = math.exp %349 : vector<1x256xf32>
    %351 = arith.subf %309, %348 : vector<1x256xf32>
    %352 = math.exp %351 : vector<1x256xf32>
    %353 = arith.subf %327, %348 : vector<1x256xf32>
    %354 = math.exp %353 : vector<1x256xf32>
    %355 = arith.subf %345, %348 : vector<1x256xf32>
    %356 = math.exp %355 : vector<1x256xf32>
    %357 = arith.addf %350, %352 : vector<1x256xf32>
    %358 = arith.addf %357, %354 : vector<1x256xf32>
    %359 = arith.addf %358, %356 : vector<1x256xf32>
    %360 = tpu.reciprocal %359 {approx = true} : vector<1x256xf32> -> vector<1x256xf32>
    %361 = arith.mulf %350, %360 : vector<1x256xf32>
    %362 = arith.mulf %361, %58 : vector<1x256xf32>
    %363 = arith.subf %362, %9 : vector<1x256xf32>
    %364 = arith.mulf %352, %360 : vector<1x256xf32>
    %365 = arith.mulf %364, %58 : vector<1x256xf32>
    %366 = arith.subf %365, %11 : vector<1x256xf32>
    %367 = arith.mulf %354, %360 : vector<1x256xf32>
    %368 = arith.mulf %367, %58 : vector<1x256xf32>
    %369 = arith.subf %368, %13 : vector<1x256xf32>
    %370 = arith.mulf %356, %360 : vector<1x256xf32>
    %371 = arith.mulf %370, %58 : vector<1x256xf32>
    %372 = arith.subf %371, %15 : vector<1x256xf32>
    %c0_159 = arith.constant 0 : index
    %c0_160 = arith.constant 0 : index
    %373 = memref.load %arg4[%c0_159, %c0_160] : memref<4x4xf32, #tpu.memory_space<smem>>
    %374 = vector.broadcast %373 : f32 to vector<1x256xf32>
    %375 = arith.mulf %363, %374 : vector<1x256xf32>
    %c1_161 = arith.constant 1 : index
    %c0_162 = arith.constant 0 : index
    %376 = memref.load %arg4[%c1_161, %c0_162] : memref<4x4xf32, #tpu.memory_space<smem>>
    %377 = vector.broadcast %376 : f32 to vector<1x256xf32>
    %378 = arith.mulf %366, %377 : vector<1x256xf32>
    %379 = arith.addf %375, %378 : vector<1x256xf32>
    %c2_163 = arith.constant 2 : index
    %c0_164 = arith.constant 0 : index
    %380 = memref.load %arg4[%c2_163, %c0_164] : memref<4x4xf32, #tpu.memory_space<smem>>
    %381 = vector.broadcast %380 : f32 to vector<1x256xf32>
    %382 = arith.mulf %369, %381 : vector<1x256xf32>
    %383 = arith.addf %379, %382 : vector<1x256xf32>
    %c3_165 = arith.constant 3 : index
    %c0_166 = arith.constant 0 : index
    %384 = memref.load %arg4[%c3_165, %c0_166] : memref<4x4xf32, #tpu.memory_space<smem>>
    %385 = vector.broadcast %384 : f32 to vector<1x256xf32>
    %386 = arith.mulf %372, %385 : vector<1x256xf32>
    %387 = arith.addf %383, %386 : vector<1x256xf32>
    %388 = arith.mulf %387, %387 : vector<1x256xf32>
    %cst_167 = arith.constant dense<0.000000e+00> : vector<1xf32>
    %389 = vector.multi_reduction <add>, %388, %cst_167 [1] : vector<1x256xf32> to vector<1xf32>
    %390 = vector.shape_cast %389 : vector<1xf32> to vector<1x1xf32>
    %cst_168 = arith.constant 1.000000e-30 : f32
    %391 = vector.broadcast %cst_168 : f32 to vector<1x1xf32>
    %392 = arith.maximumf %390, %391 : vector<1x1xf32>
    %393 = math.rsqrt %392 : vector<1x1xf32>
    %394 = vector.broadcast %393 : vector<1x1xf32> to vector<1x256xf32>
    %395 = arith.mulf %387, %394 : vector<1x256xf32>
    %c0_169 = arith.constant 0 : index
    %c1_170 = arith.constant 1 : index
    %396 = memref.load %arg4[%c0_169, %c1_170] : memref<4x4xf32, #tpu.memory_space<smem>>
    %397 = vector.broadcast %396 : f32 to vector<1x256xf32>
    %398 = arith.mulf %363, %397 : vector<1x256xf32>
    %c1_171 = arith.constant 1 : index
    %c1_172 = arith.constant 1 : index
    %399 = memref.load %arg4[%c1_171, %c1_172] : memref<4x4xf32, #tpu.memory_space<smem>>
    %400 = vector.broadcast %399 : f32 to vector<1x256xf32>
    %401 = arith.mulf %366, %400 : vector<1x256xf32>
    %402 = arith.addf %398, %401 : vector<1x256xf32>
    %c2_173 = arith.constant 2 : index
    %c1_174 = arith.constant 1 : index
    %403 = memref.load %arg4[%c2_173, %c1_174] : memref<4x4xf32, #tpu.memory_space<smem>>
    %404 = vector.broadcast %403 : f32 to vector<1x256xf32>
    %405 = arith.mulf %369, %404 : vector<1x256xf32>
    %406 = arith.addf %402, %405 : vector<1x256xf32>
    %c3_175 = arith.constant 3 : index
    %c1_176 = arith.constant 1 : index
    %407 = memref.load %arg4[%c3_175, %c1_176] : memref<4x4xf32, #tpu.memory_space<smem>>
    %408 = vector.broadcast %407 : f32 to vector<1x256xf32>
    %409 = arith.mulf %372, %408 : vector<1x256xf32>
    %410 = arith.addf %406, %409 : vector<1x256xf32>
    %411 = arith.mulf %410, %410 : vector<1x256xf32>
    %cst_177 = arith.constant dense<0.000000e+00> : vector<1xf32>
    %412 = vector.multi_reduction <add>, %411, %cst_177 [1] : vector<1x256xf32> to vector<1xf32>
    %413 = vector.shape_cast %412 : vector<1xf32> to vector<1x1xf32>
    %cst_178 = arith.constant 1.000000e-30 : f32
    %414 = vector.broadcast %cst_178 : f32 to vector<1x1xf32>
    %415 = arith.maximumf %413, %414 : vector<1x1xf32>
    %416 = math.rsqrt %415 : vector<1x1xf32>
    %417 = vector.broadcast %416 : vector<1x1xf32> to vector<1x256xf32>
    %418 = arith.mulf %410, %417 : vector<1x256xf32>
    %c0_179 = arith.constant 0 : index
    %c2_180 = arith.constant 2 : index
    %419 = memref.load %arg4[%c0_179, %c2_180] : memref<4x4xf32, #tpu.memory_space<smem>>
    %420 = vector.broadcast %419 : f32 to vector<1x256xf32>
    %421 = arith.mulf %363, %420 : vector<1x256xf32>
    %c1_181 = arith.constant 1 : index
    %c2_182 = arith.constant 2 : index
    %422 = memref.load %arg4[%c1_181, %c2_182] : memref<4x4xf32, #tpu.memory_space<smem>>
    %423 = vector.broadcast %422 : f32 to vector<1x256xf32>
    %424 = arith.mulf %366, %423 : vector<1x256xf32>
    %425 = arith.addf %421, %424 : vector<1x256xf32>
    %c2_183 = arith.constant 2 : index
    %c2_184 = arith.constant 2 : index
    %426 = memref.load %arg4[%c2_183, %c2_184] : memref<4x4xf32, #tpu.memory_space<smem>>
    %427 = vector.broadcast %426 : f32 to vector<1x256xf32>
    %428 = arith.mulf %369, %427 : vector<1x256xf32>
    %429 = arith.addf %425, %428 : vector<1x256xf32>
    %c3_185 = arith.constant 3 : index
    %c2_186 = arith.constant 2 : index
    %430 = memref.load %arg4[%c3_185, %c2_186] : memref<4x4xf32, #tpu.memory_space<smem>>
    %431 = vector.broadcast %430 : f32 to vector<1x256xf32>
    %432 = arith.mulf %372, %431 : vector<1x256xf32>
    %433 = arith.addf %429, %432 : vector<1x256xf32>
    %434 = arith.mulf %433, %433 : vector<1x256xf32>
    %cst_187 = arith.constant dense<0.000000e+00> : vector<1xf32>
    %435 = vector.multi_reduction <add>, %434, %cst_187 [1] : vector<1x256xf32> to vector<1xf32>
    %436 = vector.shape_cast %435 : vector<1xf32> to vector<1x1xf32>
    %cst_188 = arith.constant 1.000000e-30 : f32
    %437 = vector.broadcast %cst_188 : f32 to vector<1x1xf32>
    %438 = arith.maximumf %436, %437 : vector<1x1xf32>
    %439 = math.rsqrt %438 : vector<1x1xf32>
    %440 = vector.broadcast %439 : vector<1x1xf32> to vector<1x256xf32>
    %441 = arith.mulf %433, %440 : vector<1x256xf32>
    %c0_189 = arith.constant 0 : index
    %c3_190 = arith.constant 3 : index
    %442 = memref.load %arg4[%c0_189, %c3_190] : memref<4x4xf32, #tpu.memory_space<smem>>
    %443 = vector.broadcast %442 : f32 to vector<1x256xf32>
    %444 = arith.mulf %363, %443 : vector<1x256xf32>
    %c1_191 = arith.constant 1 : index
    %c3_192 = arith.constant 3 : index
    %445 = memref.load %arg4[%c1_191, %c3_192] : memref<4x4xf32, #tpu.memory_space<smem>>
    %446 = vector.broadcast %445 : f32 to vector<1x256xf32>
    %447 = arith.mulf %366, %446 : vector<1x256xf32>
    %448 = arith.addf %444, %447 : vector<1x256xf32>
    %c2_193 = arith.constant 2 : index
    %c3_194 = arith.constant 3 : index
    %449 = memref.load %arg4[%c2_193, %c3_194] : memref<4x4xf32, #tpu.memory_space<smem>>
    %450 = vector.broadcast %449 : f32 to vector<1x256xf32>
    %451 = arith.mulf %369, %450 : vector<1x256xf32>
    %452 = arith.addf %448, %451 : vector<1x256xf32>
    %c3_195 = arith.constant 3 : index
    %c3_196 = arith.constant 3 : index
    %453 = memref.load %arg4[%c3_195, %c3_196] : memref<4x4xf32, #tpu.memory_space<smem>>
    %454 = vector.broadcast %453 : f32 to vector<1x256xf32>
    %455 = arith.mulf %372, %454 : vector<1x256xf32>
    %456 = arith.addf %452, %455 : vector<1x256xf32>
    %457 = arith.mulf %456, %456 : vector<1x256xf32>
    %cst_197 = arith.constant dense<0.000000e+00> : vector<1xf32>
    %458 = vector.multi_reduction <add>, %457, %cst_197 [1] : vector<1x256xf32> to vector<1xf32>
    %459 = vector.shape_cast %458 : vector<1xf32> to vector<1x1xf32>
    %cst_198 = arith.constant 1.000000e-30 : f32
    %460 = vector.broadcast %cst_198 : f32 to vector<1x1xf32>
    %461 = arith.maximumf %459, %460 : vector<1x1xf32>
    %462 = math.rsqrt %461 : vector<1x1xf32>
    %463 = vector.broadcast %462 : vector<1x1xf32> to vector<1x256xf32>
    %464 = arith.mulf %456, %463 : vector<1x256xf32>
    %cst_199 = arith.constant 1.000000e+00 : f32
    %465 = vector.broadcast %cst_199 : f32 to vector<1x256xf32>
    %466 = arith.mulf %465, %395 : vector<1x256xf32>
    %467 = arith.addf %1, %466 : vector<1x256xf32>
    %c0_200 = arith.constant 0 : index
    %c0_201 = arith.constant 0 : index
    %c0_202 = arith.constant 0 : index
    %468 = vector.load %arg6[%c0_200, %c0_201, %c0_202] : memref<1x4x256xf32, #tpu.memory_space<vmem>>, vector<1x1x256xf32>
    %469 = vector.shape_cast %468 : vector<1x1x256xf32> to vector<1x256xf32>
    %470 = vector.shape_cast %467 : vector<1x256xf32> to vector<1x1x256xf32>
    tpu.vector_store %arg6[%c0_200, %c0_201, %c0_202], %470 {strides = array<i32>} : memref<1x4x256xf32, #tpu.memory_space<vmem>>, vector<1x1x256xf32>,
    %cst_203 = arith.constant 1.000000e+00 : f32
    %471 = vector.broadcast %cst_203 : f32 to vector<1x256xf32>
    %472 = arith.mulf %471, %418 : vector<1x256xf32>
    %473 = arith.addf %3, %472 : vector<1x256xf32>
    %c0_204 = arith.constant 0 : index
    %c1_205 = arith.constant 1 : index
    %c0_206 = arith.constant 0 : index
    %474 = vector.load %arg6[%c0_204, %c1_205, %c0_206] : memref<1x4x256xf32, #tpu.memory_space<vmem>>, vector<1x1x256xf32>
    %475 = vector.shape_cast %474 : vector<1x1x256xf32> to vector<1x256xf32>
    %476 = vector.shape_cast %473 : vector<1x256xf32> to vector<1x1x256xf32>
    tpu.vector_store %arg6[%c0_204, %c1_205, %c0_206], %476 {strides = array<i32>} : memref<1x4x256xf32, #tpu.memory_space<vmem>>, vector<1x1x256xf32>,
    %cst_207 = arith.constant 1.000000e+00 : f32
    %477 = vector.broadcast %cst_207 : f32 to vector<1x256xf32>
    %478 = arith.mulf %477, %441 : vector<1x256xf32>
    %479 = arith.addf %5, %478 : vector<1x256xf32>
    %c0_208 = arith.constant 0 : index
    %c2_209 = arith.constant 2 : index
    %c0_210 = arith.constant 0 : index
    %480 = vector.load %arg6[%c0_208, %c2_209, %c0_210] : memref<1x4x256xf32, #tpu.memory_space<vmem>>, vector<1x1x256xf32>
    %481 = vector.shape_cast %480 : vector<1x1x256xf32> to vector<1x256xf32>
    %482 = vector.shape_cast %479 : vector<1x256xf32> to vector<1x1x256xf32>
    tpu.vector_store %arg6[%c0_208, %c2_209, %c0_210], %482 {strides = array<i32>} : memref<1x4x256xf32, #tpu.memory_space<vmem>>, vector<1x1x256xf32>,
    %cst_211 = arith.constant 1.000000e+00 : f32
    %483 = vector.broadcast %cst_211 : f32 to vector<1x256xf32>
    %484 = arith.mulf %483, %464 : vector<1x256xf32>
    %485 = arith.addf %7, %484 : vector<1x256xf32>
    %c0_212 = arith.constant 0 : index
    %c3_213 = arith.constant 3 : index
    %c0_214 = arith.constant 0 : index
    %486 = vector.load %arg6[%c0_212, %c3_213, %c0_214] : memref<1x4x256xf32, #tpu.memory_space<vmem>>, vector<1x1x256xf32>
    %487 = vector.shape_cast %486 : vector<1x1x256xf32> to vector<1x256xf32>
    %488 = vector.shape_cast %485 : vector<1x256xf32> to vector<1x1x256xf32>
    tpu.vector_store %arg6[%c0_212, %c3_213, %c0_214], %488 {strides = array<i32>} : memref<1x4x256xf32, #tpu.memory_space<vmem>>, vector<1x1x256xf32>,
    return
  }
  func.func @transform_0(%arg0: i32) -> (i32, i32, i32) {
    %c0_i32 = arith.constant 0 : i32
    %c0_i32_0 = arith.constant 0 : i32
    %c0_i32_1 = arith.constant 0 : i32
    return %arg0, %c0_i32, %c0_i32_0 : i32, i32, i32
  }
  func.func @transform_1(%arg0: i32) -> (i32, i32, i32) {
    %c0_i32 = arith.constant 0 : i32
    %c0_i32_0 = arith.constant 0 : i32
    %c0_i32_1 = arith.constant 0 : i32
    return %arg0, %c0_i32, %c0_i32_0 : i32, i32, i32
  }
  func.func @transform_2(%arg0: i32) -> (i32, i32, i32) {
    %c0_i32 = arith.constant 0 : i32
    %c0_i32_0 = arith.constant 0 : i32
    %c0_i32_1 = arith.constant 0 : i32
    return %arg0, %c0_i32, %c0_i32_0 : i32, i32, i32
  }
  func.func @transform_3(%arg0: i32) -> (i32, i32) {
    %c0_i32 = arith.constant 0 : i32
    %c0_i32_0 = arith.constant 0 : i32
    %c0_i32_1 = arith.constant 0 : i32
    return %c0_i32, %c0_i32_0 : i32, i32
  }
  func.func @transform_4(%arg0: i32) -> i32 {
    %c0_i32 = arith.constant 0 : i32
    %c0_i32_0 = arith.constant 0 : i32
    return %c0_i32 : i32
  }
  func.func @transform_5(%arg0: i32) -> (i32, i32, i32) {
    %c0_i32 = arith.constant 0 : i32
    %c0_i32_0 = arith.constant 0 : i32
    %c0_i32_1 = arith.constant 0 : i32
    return %arg0, %c0_i32, %c0_i32_0 : i32, i32, i32
  }
}

</mosaic_0001>

<llo_original>
// kernel: tpu_custom_call.1
$region0: #{tpu_custom_call.1}
  #allocation0 [shape = 'u32[]', space=smem, size = 0x4, offset = 0x4, fixed_abs, tag = 'smem constant byte address 0x4 - core index']
  #allocation1 [shape = 'u32[144,128]{1,0:T(1,128)}', space=vmem, size = 0x12000, scoped, tag = 'internal scratch']
  %s0 = inlined_call_operand.hbm [shape: f32[2,4,256], index: 0, kind: input, shape index: {}]
  %s1 = inlined_call_operand.hbm [shape: f32[2,4,256], index: 1, kind: input, shape index: {}]
  %s2 = inlined_call_operand.hbm [shape: f32[2,4,256], index: 2, kind: input, shape index: {}]
  %s3 = inlined_call_operand.vmem [shape: f32[4,4], index: 3, kind: input, shape index: {}]
  %s4 = inlined_call_operand.vmem [shape: f32[4], index: 4, kind: input, shape index: {}]
  %s5 = inlined_call_operand.hbm [shape: f32[2,4,256], index: 5, kind: output, shape index: {}]
  %s6 = sld [smem:[#allocation0]]
  $region73: #{tpu_custom_call.1} parent=0
    _
  %s8 = ssub.s32 1, %s6
  %s9 = scalar_select 0, %s8, %s6
  $region1: #{tpu_custom_call.1} parent=0
    #allocation2 [shape = 'u8[8192]{0}', space=vmem, size = 0x2000, scoped, tag = 'input window, operand 0']
    #allocation3 [shape = 's32[2]{0}', space=sflag, size = 0x8, scoped, tag = 'scoped memory for tpu_custom_call.1']
    #allocation4 [shape = 's32[2]{0}', space=sflag, size = 0x8, scoped, tag = 'scoped memory for tpu_custom_call.1']
    #allocation5 [shape = 's32[2]{0}', space=sflag, size = 0x8, scoped, tag = 'scoped memory for tpu_custom_call.1']
    #allocation6 [shape = 'u8[8192]{0}', space=vmem, size = 0x2000, scoped, tag = 'input window, operand 1']
    #allocation7 [shape = 's32[2]{0}', space=sflag, size = 0x8, scoped, tag = 'scoped memory for tpu_custom_call.1']
    #allocation8 [shape = 'u8[8192]{0}', space=vmem, size = 0x2000, scoped, tag = 'input window, operand 2']
    #allocation9 [shape = 'u8[2048]{0}', space=smem, size = 0x800, scoped, tag = 'input window, operand 3, single buffered']
    #allocation10 [shape = 'u8[512]{0}', space=smem, size = 0x200, scoped, tag = 'input window, operand 4, single buffered']
    #allocation11 [shape = 's32[1]{0}', space=sflag, size = 0x4, scoped, tag = 'scoped memory for tpu_custom_call.1']
    #allocation12 [shape = 'u8[8192]{0}', space=vmem, size = 0x2000, scoped, tag = 'output window, operand 0']
    %10 = vsyncpa [#allocation3], 0
    %s11 = scalar_lea.sflag [#allocation3], 1
    %12 = vsyncpa %s11, 0
    %13 = vsyncpa [#allocation7], 0
    %s14 = scalar_lea.sflag [#allocation7], 1
    %15 = vsyncpa %s14, 0
    %16 = vsyncpa [#allocation5], 0
    %17 = vsyncpa [#allocation11], 0
    %18 = vsyncpa [#allocation4], 0
    %s19 = scalar_lea.sflag [#allocation4], 1
    %20 = vsyncpa %s19, 0
    loop: start=0, step=1, limit=4
    $region2: #{tpu_custom_call.1} parent=1 // loop_pre_header
      _
    $region3: #{tpu_custom_call.1} parent=1 // loop_header
      %s22 = sphi 0, %s26
      %p23 = scmp.ge.s32.totalorder %s22, 4
      %s32 = sphi 0, %s34
      %s35 = sphi 0, %s32
      %s36 = sphi 0, %s35
      %s52 = sphi 0, %s36
      %s58 = sphi 0, %s60
      %s61 = sphi 0, %s58
      %s62 = sphi 0, %s61
      %s78 = sphi 0, %s62
      %s84 = sphi 0, %s86
      %s87 = sphi 0, %s84
      %s88 = sphi 0, %s87
      %s104 = sphi 0, %s88
      %s108 = sphi 0, %s108
      %s110 = sphi 0, %s108
      %s111 = sphi 0, %s110
      %s125 = sphi 0, %s111
      %s129 = sphi 0, %s129
      %s131 = sphi 0, %s129
      %s132 = sphi 0, %s131
      %s146 = sphi 0, %s132
      %s152 = sphi 0, %s154
      %s155 = sphi 0, %s152
      %s156 = sphi 0, %s155
      %s172 = sphi 0, %s156
    $region4: #{tpu_custom_call.1} parent=1 // loop_header_branch
      %25 = sbr.rel (%p23) target = $region8
    $region5: #{tpu_custom_call.1} parent=1 // loop_body
      %s27 = ssub.s32 %s22, 1
      %s28 = ssub.s32 %s22, 2
      %s29 = sadd.s32 %s22, 1
      %s30 = ssub.s32 %s22, %s29
      %p31 = scmp.eq.s32.totalorder %s30, 0
      %s33 = sadd.s32 %s32, 1
      %s34 = scalar_select %p31, %s32, %s33
      %p37 = pneg %p31
      %p38 = scmp.eq.s32.totalorder %s22, 1
      %p39 = por %p37, %p38
      %p40 = scmp.ne.s32.totalorder %s32, %s35
      %p41 = scmp.eq.s32.totalorder %s22, 0
      %p42 = por %p40, %p41
      %p43 = scmp.ne.s32.totalorder %s32, %s35
      %p44 = scmp.eq.s32.totalorder %s27, 1
      %p45 = por %p43, %p44
      %p46 = scmp.ne.s32.totalorder %s35, %s36
      %p47 = scmp.eq.s32.totalorder %s27, 0
      %p48 = por %p46, %p47
      %p49 = scmp.ne.s32.totalorder %s35, %s36
      %p50 = scmp.eq.s32.totalorder %s28, 1
      %p51 = por %p49, %p50
      %p53 = scmp.ne.s32.totalorder %s36, %s52
      %p54 = scmp.eq.s32.totalorder %s28, 0
      %p55 = por %p53, %p54
      %s56 = ssub.s32 %s22, %s29
      %p57 = scmp.eq.s32.totalorder %s56, 0
      %s59 = sadd.s32 %s58, 1
      %s60 = scalar_select %p57, %s58, %s59
      %p63 = pneg %p57
      %p64 = scmp.eq.s32.totalorder %s22, 1
      %p65 = por %p63, %p64
      %p66 = scmp.ne.s32.totalorder %s58, %s61
      %p67 = scmp.eq.s32.totalorder %s22, 0
      %p68 = por %p66, %p67
      %p69 = scmp.ne.s32.totalorder %s58, %s61
      %p70 = scmp.eq.s32.totalorder %s27, 1
      %p71 = por %p69, %p70
      %p72 = scmp.ne.s32.totalorder %s61, %s62
      %p73 = scmp.eq.s32.totalorder %s27, 0
      %p74 = por %p72, %p73
      %p75 = scmp.ne.s32.totalorder %s61, %s62
      %p76 = scmp.eq.s32.totalorder %s28, 1
      %p77 = por %p75, %p76
      %p79 = scmp.ne.s32.totalorder %s62, %s78
      %p80 = scmp.eq.s32.totalorder %s28, 0
      %p81 = por %p79, %p80
      %s82 = ssub.s32 %s22, %s29
      %p83 = scmp.eq.s32.totalorder %s82, 0
      %s85 = sadd.s32 %s84, 1
      %s86 = scalar_select %p83, %s84, %s85
      %p89 = pneg %p83
      %p90 = scmp.eq.s32.totalorder %s22, 1
      %p91 = por %p89, %p90
      %p92 = scmp.ne.s32.totalorder %s84, %s87
      %p93 = scmp.eq.s32.totalorder %s22, 0
      %p94 = por %p92, %p93
      %p95 = scmp.ne.s32.totalorder %s84, %s87
      %p96 = scmp.eq.s32.totalorder %s27, 1
      %p97 = por %p95, %p96
      %p98 = scmp.ne.s32.totalorder %s87, %s88
      %p99 = scmp.eq.s32.totalorder %s27, 0
      %p100 = por %p98, %p99
      %p101 = scmp.ne.s32.totalorder %s87, %s88
      %p102 = scmp.eq.s32.totalorder %s28, 1
      %p103 = por %p101, %p102
      %p105 = scmp.ne.s32.totalorder %s88, %s104
      %p106 = scmp.eq.s32.totalorder %s28, 0
      %p107 = por %p105, %p106
      %s109 = sadd.s32 %s108, 1
      %p112 = scmp.eq.s32.totalorder %s22, 1
      %p113 = scmp.ne.s32.totalorder %s108, %s110
      %p114 = scmp.eq.s32.totalorder %s22, 0
      %p115 = por %p113, %p114
      %p116 = scmp.ne.s32.totalorder %s108, %s110
      %p117 = scmp.eq.s32.totalorder %s27, 1
      %p118 = por %p116, %p117
      %p119 = scmp.ne.s32.totalorder %s110, %s111
      %p120 = scmp.eq.s32.totalorder %s27, 0
      %p121 = por %p119, %p120
      %p122 = scmp.ne.s32.totalorder %s110, %s111
      %p123 = scmp.eq.s32.totalorder %s28, 1
      %p124 = por %p122, %p123
      %p126 = scmp.ne.s32.totalorder %s111, %s125
      %p127 = scmp.eq.s32.totalorder %s28, 0
      %p128 = por %p126, %p127
      %s130 = sadd.s32 %s129, 1
      %p133 = scmp.eq.s32.totalorder %s22, 1
      %p134 = scmp.ne.s32.totalorder %s129, %s131
      %p135 = scmp.eq.s32.totalorder %s22, 0
      %p136 = por %p134, %p135
      %p137 = scmp.ne.s32.totalorder %s129, %s131
      %p138 = scmp.eq.s32.totalorder %s27, 1
      %p139 = por %p137, %p138
      %p140 = scmp.ne.s32.totalorder %s131, %s132
      %p141 = scmp.eq.s32.totalorder %s27, 0
      %p142 = por %p140, %p141
      %p143 = scmp.ne.s32.totalorder %s131, %s132
      %p144 = scmp.eq.s32.totalorder %s28, 1
      %p145 = por %p143, %p144
      %p147 = scmp.ne.s32.totalorder %s132, %s146
      %p148 = scmp.eq.s32.totalorder %s28, 0
      %p149 = por %p147, %p148
      %s150 = ssub.s32 %s22, %s29
      %p151 = scmp.eq.s32.totalorder %s150, 0
      %s153 = sadd.s32 %s152, 1
      %s154 = scalar_select %p151, %s152, %s153
      %p157 = pneg %p151
      %p158 = scmp.eq.s32.totalorder %s22, 1
      %p159 = por %p157, %p158
      %p160 = scmp.ne.s32.totalorder %s152, %s155
      %p161 = scmp.eq.s32.totalorder %s22, 0
      %p162 = por %p160, %p161
      %p163 = scmp.ne.s32.totalorder %s152, %s155
      %p164 = scmp.eq.s32.totalorder %s27, 1
      %p165 = por %p163, %p164
      %p166 = scmp.ne.s32.totalorder %s155, %s156
      %p167 = scmp.eq.s32.totalorder %s27, 0
      %p168 = por %p166, %p167
      %p169 = scmp.ne.s32.totalorder %s155, %s156
      %p170 = scmp.eq.s32.totalorder %s28, 1
      %p171 = por %p169, %p170
      %p173 = scmp.ne.s32.totalorder %s156, %s172
      %p174 = scmp.eq.s32.totalorder %s28, 0
      %p175 = por %p173, %p174
      %p176 = scmp.le.s32.totalorder 1, %s22
      %p177 = scmp.lt.s32.totalorder %s22, 3
      %p178 = pnand %p176, %p177
      %p179 = pneg %p178
      // Predicated region
      $region9: #{tpu_custom_call.1} parent=5 // pred_check
        _
      $region10: #{tpu_custom_call.1} parent=5 // pred_check_branch
        %181 = sbr.rel (%p178) target = $region12
      $region11: #{tpu_custom_call.1} parent=5 // pred_region
        %s182 = ssub.s32 %s22, 1
        // Predicated region
        $region13: #{tpu_custom_call.1} parent=11 // pred_check
          %p183 = pneg %p121
        $region14: #{tpu_custom_call.1} parent=11 // pred_check_branch
          %185 = sbr.rel (%p183) target = $region16
        $region15: #{tpu_custom_call.1} parent=11 // pred_region
          %s187 = ssub.s32 64, 64
          %188 = vsyncadd [#allocation5], %s187
          %s190 = sshll.u32 %s3, 4
          %s191 = int_to_ptr.vmem [resolvable:$true] %s190
          %193 = dma.vmem_to_smem %s191, 64, [#allocation9], [#allocation5]
        $region16: #{tpu_custom_call.1} parent=11 // pred_fallthru
          _
        // Predicated region
        $region17: #{tpu_custom_call.1} parent=11 // pred_check
          %p194 = pneg %p142
        $region18: #{tpu_custom_call.1} parent=11 // pred_check_branch
          %196 = sbr.rel (%p194) target = $region20
        $region19: #{tpu_custom_call.1} parent=11 // pred_region
          %s198 = ssub.s32 16, 16
          %199 = vsyncadd [#allocation11], %s198
          %s201 = sshll.u32 %s4, 4
          %s202 = int_to_ptr.vmem [resolvable:$true] %s201
          %204 = dma.vmem_to_smem %s202, 16, [#allocation10], [#allocation11]
        $region20: #{tpu_custom_call.1} parent=11 // pred_fallthru
          _
      $region12: #{tpu_custom_call.1} parent=5 // pred_fallthru
        _
      %p205 = scmp.lt.s32.totalorder %s22, 2
      // Predicated region
      $region21: #{tpu_custom_call.1} parent=5 // pred_check
        %p206 = pneg %p205
      $region22: #{tpu_custom_call.1} parent=5 // pred_check_branch
        %208 = sbr.rel (%p206) target = $region24
      $region23: #{tpu_custom_call.1} parent=5 // pred_region
        // Predicated region
        $region25: #{tpu_custom_call.1} parent=23 // pred_check
          %p209 = pneg %p42
        $region26: #{tpu_custom_call.1} parent=23 // pred_check_branch
          %211 = sbr.rel (%p209) target = $region28
        $region27: #{tpu_custom_call.1} parent=23 // pred_region
          %s212 = sand.u32 %s32, 1
          %s213 = scalar_lea.sflag [#allocation3], %s212
          %s214 = sand.u32 %s32, 1
          %s215 = smul.addr %s214, 8
          %s216 = scalar_lea.vmem [#allocation2], %s215
          %s218 = ssub.s32 128, 128
          %219 = vsyncadd %s213, %s218
          %s220 = smul.addr %s22, 2
          %s221 = smul.addr %s220, 64
          %s222 = scalar_lea.hbm %s0, %s221
          %s224 = sshll.u32 %s216, 4
          %s225 = int_to_ptr.vmem [resolvable:$true] %s224
          %227 = dma.hbm_to_vmem [thread:$0]  %s222, 128, %s225, %s213
        $region28: #{tpu_custom_call.1} parent=23 // pred_fallthru
          _
        // Predicated region
        $region29: #{tpu_custom_call.1} parent=23 // pred_check
          %p228 = pneg %p68
        $region30: #{tpu_custom_call.1} parent=23 // pred_check_branch
          %230 = sbr.rel (%p228) target = $region32
        $region31: #{tpu_custom_call.1} parent=23 // pred_region
          %s231 = sand.u32 %s22, 1
          %s232 = scalar_lea.sflag [#allocation7], %s231
          %s233 = sand.u32 %s58, 1
          %s234 = smul.addr %s233, 8
          %s235 = scalar_lea.vmem [#allocation6], %s234
          %s237 = ssub.s32 128, 128
          %238 = vsyncadd %s232, %s237
          %s239 = smul.addr %s22, 2
          %s240 = smul.addr %s239, 64
          %s241 = scalar_lea.hbm %s1, %s240
          %s243 = sshll.u32 %s235, 4
          %s244 = int_to_ptr.vmem [resolvable:$true] %s243
          %246 = dma.hbm_to_vmem [thread:$0]  %s241, 128, %s244, %s232
        $region32: #{tpu_custom_call.1} parent=23 // pred_fallthru
          _
        // Predicated region
        $region33: #{tpu_custom_call.1} parent=23 // pred_check
          %p247 = pneg %p94
        $region34: #{tpu_custom_call.1} parent=23 // pred_check_branch
          %249 = sbr.rel (%p247) target = $region36
        $region35: #{tpu_custom_call.1} parent=23 // pred_region
          %s250 = sand.u32 %s22, 1
          %s251 = scalar_lea.sflag [#allocation7], %s250
          %s252 = sand.u32 %s84, 1
          %s253 = smul.addr %s252, 8
          %s254 = scalar_lea.vmem [#allocation8], %s253
          %s256 = ssub.s32 128, 128
          %257 = vsyncadd %s251, %s256
          %s258 = smul.addr %s22, 2
          %s259 = smul.addr %s258, 64
          %s260 = scalar_lea.hbm %s2, %s259
          %s262 = sshll.u32 %s254, 4
          %s263 = int_to_ptr.vmem [resolvable:$true] %s262
          %265 = dma.hbm_to_vmem [thread:$0]  %s260, 128, %s263, %s251
        $region36: #{tpu_custom_call.1} parent=23 // pred_fallthru
          _
      $region24: #{tpu_custom_call.1} parent=5 // pred_fallthru
        _
      %p266 = scmp.le.s32.totalorder 1, %s22
      %p267 = scmp.lt.s32.totalorder %s22, 3
      %p268 = pnand %p266, %p267
      %p269 = pneg %p268
      // Predicated region
      $region37: #{tpu_custom_call.1} parent=5 // pred_check
        _
      $region38: #{tpu_custom_call.1} parent=5 // pred_check_branch
        %271 = sbr.rel (%p268) target = $region40
      $region39: #{tpu_custom_call.1} parent=5 // pred_region
        %s272 = ssub.s32 %s22, 1
        %s273 = sand.u32 %s35, 1
        %s274 = scalar_lea.sflag [#allocation3], %s273
        %s275 = sand.u32 %s35, 1
        %s276 = smul.addr %s275, 8
        %s277 = scalar_lea.vmem [#allocation2], %s276
        // Predicated region
        $region41: #{tpu_custom_call.1} parent=39 // pred_check
          %p278 = pneg %p48
        $region42: #{tpu_custom_call.1} parent=39 // pred_check_branch
          %280 = sbr.rel (%p278) target = $region44
        $region43: #{tpu_custom_call.1} parent=39 // pred_region
          %281 = dma.done %s274, 128
        $region44: #{tpu_custom_call.1} parent=39 // pred_fallthru
          _
        %s282 = sand.u32 %s27, 1
        %s283 = scalar_lea.sflag [#allocation7], %s282
        %s284 = sand.u32 %s61, 1
        %s285 = smul.addr %s284, 8
        %s286 = scalar_lea.vmem [#allocation6], %s285
        // Predicated region
        $region45: #{tpu_custom_call.1} parent=39 // pred_check
          %p287 = pneg %p74
        $region46: #{tpu_custom_call.1} parent=39 // pred_check_branch
          %289 = sbr.rel (%p287) target = $region48
        $region47: #{tpu_custom_call.1} parent=39 // pred_region
          %290 = dma.done %s283, 128
        $region48: #{tpu_custom_call.1} parent=39 // pred_fallthru
          _
        %s291 = sand.u32 %s27, 1
        %s292 = scalar_lea.sflag [#allocation7], %s291
        %s293 = sand.u32 %s87, 1
        %s294 = smul.addr %s293, 8
        %s295 = scalar_lea.vmem [#allocation8], %s294
        // Predicated region
        $region49: #{tpu_custom_call.1} parent=39 // pred_check
          %p296 = pneg %p100
        $region50: #{tpu_custom_call.1} parent=39 // pred_check_branch
          %298 = sbr.rel (%p296) target = $region52
        $region51: #{tpu_custom_call.1} parent=39 // pred_region
          %299 = dma.done %s292, 128
        $region52: #{tpu_custom_call.1} parent=39 // pred_fallthru
          _
        // Predicated region
        $region53: #{tpu_custom_call.1} parent=39 // pred_check
          %p300 = pneg %p121
        $region54: #{tpu_custom_call.1} parent=39 // pred_check_branch
          %302 = sbr.rel (%p300) target = $region56
        $region55: #{tpu_custom_call.1} parent=39 // pred_region
          %303 = dma.done [#allocation5], 64
        $region56: #{tpu_custom_call.1} parent=39 // pred_fallthru
          _
        // Predicated region
        $region57: #{tpu_custom_call.1} parent=39 // pred_check
          %p304 = pneg %p142
        $region58: #{tpu_custom_call.1} parent=39 // pred_check_branch
          %306 = sbr.rel (%p304) target = $region60
        $region59: #{tpu_custom_call.1} parent=39 // pred_region
          %307 = dma.done [#allocation11], 16
        $region60: #{tpu_custom_call.1} parent=39 // pred_fallthru
          _
        %308 = sfence
        %s309 = sand.u32 %s35, 1
        %s310 = scalar_lea.sflag [#allocation3], %s309
        %s311 = sand.u32 %s35, 1
        %s312 = smul.addr %s311, 8
        %s313 = scalar_lea.vmem [#allocation2], %s312
        %p314 = pneg %p48
        %p315 = pneg %p45
        %s316 = sand.u32 %s27, 1
        %s317 = scalar_lea.sflag [#allocation7], %s316
        %s318 = sand.u32 %s61, 1
        %s319 = smul.addr %s318, 8
        %s320 = scalar_lea.vmem [#allocation6], %s319
        %p321 = pneg %p74
        %p322 = pneg %p71
        %s323 = sand.u32 %s27, 1
        %s324 = scalar_lea.sflag [#allocation7], %s323
        %s325 = sand.u32 %s87, 1
        %s326 = smul.addr %s325, 8
        %s327 = scalar_lea.vmem [#allocation8], %s326
        %p328 = pneg %p100
        %p329 = pneg %p97
        %p330 = pneg %p121
        %p331 = pneg %p118
        %p332 = pneg %p142
        %p333 = pneg %p139
        %p334 = pneg %p168
        %p335 = pneg %p165
        %s336 = sand.u32 %s155, 1
        %s337 = scalar_lea.sflag [#allocation4], %s336
        %s338 = sand.u32 %s155, 1
        %s339 = smul.addr %s338, 8
        %s340 = scalar_lea.vmem [#allocation12], %s339
        %v341 = vld [vmem:[%s277] ss:$4 sm:$0x3]
        %s342 = scalar_lea.vmem %s277, 1 [#allocation2]
        %v343 = vld [vmem:[%s342] ss:$4 sm:$0x3]
        %s344 = scalar_lea.vmem %s277, 2 [#allocation2]
        %v345 = vld [vmem:[%s344] ss:$4 sm:$0x3]
        %s346 = scalar_lea.vmem %s277, 3 [#allocation2]
        %v347 = vld [vmem:[%s346] ss:$4 sm:$0x3]
        %v348 = vld [vmem:[%s286] ss:$4 sm:$0x3]
        %s349 = scalar_lea.vmem %s286, 1 [#allocation6]
        %v350 = vld [vmem:[%s349] ss:$4 sm:$0x3]
        %s351 = scalar_lea.vmem %s286, 2 [#allocation6]
        %v352 = vld [vmem:[%s351] ss:$4 sm:$0x3]
        %s353 = scalar_lea.vmem %s286, 3 [#allocation6]
        %v354 = vld [vmem:[%s353] ss:$4 sm:$0x3]
        %v355 = vld [vmem:[%s295] ss:$4 sm:$0x3]
        %v356 = vmul.f32 %v355, %v355
        %v358 = vlaneseq
        %v359 = vshrl.u32 %v358, 7
        %v360 = vsub.s32 0, %v359
        %v361 = vrot.slane %v356, %v360
        %v362 = vlaneseq
        %v363 = vshrl.u32 %v362, 7
        %v364 = vsub.s32 1, %v363
        %v365 = vrot.slane %v356, %v364
        %vm368 = vcmask 1040384
        %v369 = vsel %vm368, %v361, 0.0
        %v370 = vsel %vm368, %v365, 0.0
        %v371 = vadd.f32 %v369, %v370
        %372 = vadd.xlane.f32.xlu0 %v371
        %v373 = vpop.xlane.xlu0 %372
        %v374 = vmax.f32 %v373, 1e-30
        %v375 = vrsqrt.pop %v374
        %v377 = vlaneseq
        %v378 = vshrl.u32 %v377, 7
        %v379 = vsub.s32 0, %v378
        %v380 = vrot.slane %v375, %v379
        %v382 = vmul.f32 %v355, %v380
        %s383 = scalar_lea.vmem %s295, 1 [#allocation8]
        %v384 = vld [vmem:[%s383] ss:$4 sm:$0x3]
        %v385 = vmul.f32 %v384, %v384
        %v387 = vlaneseq
        %v388 = vshrl.u32 %v387, 7
        %v389 = vsub.s32 0, %v388
        %v390 = vrot.slane %v385, %v389
        %v391 = vlaneseq
        %v392 = vshrl.u32 %v391, 7
        %v393 = vsub.s32 1, %v392
        %v394 = vrot.slane %v385, %v393
        %v397 = vsel %vm368, %v390, 0.0
        %v398 = vsel %vm368, %v394, 0.0
        %v399 = vadd.f32 %v397, %v398
        %400 = vadd.xlane.f32.xlu0 %v399
        %v401 = vpop.xlane.xlu0 %400
        %v402 = vmax.f32 %v401, 1e-30
        %v403 = vrsqrt.pop %v402
        %v405 = vlaneseq
        %v406 = vshrl.u32 %v405, 7
        %v407 = vsub.s32 0, %v406
        %v408 = vrot.slane %v403, %v407
        %v410 = vmul.f32 %v384, %v408
        %s411 = scalar_lea.vmem %s295, 2 [#allocation8]
        %v412 = vld [vmem:[%s411] ss:$4 sm:$0x3]
        %v413 = vmul.f32 %v412, %v412
        %v415 = vlaneseq
        %v416 = vshrl.u32 %v415, 7
        %v417 = vsub.s32 0, %v416
        %v418 = vrot.slane %v413, %v417
        %v419 = vlaneseq
        %v420 = vshrl.u32 %v419, 7
        %v421 = vsub.s32 1, %v420
        %v422 = vrot.slane %v413, %v421
        %v425 = vsel %vm368, %v418, 0.0
        %v426 = vsel %vm368, %v422, 0.0
        %v427 = vadd.f32 %v425, %v426
        %428 = vadd.xlane.f32.xlu0 %v427
        %v429 = vpop.xlane.xlu0 %428
        %v430 = vmax.f32 %v429, 1e-30
        %v431 = vrsqrt.pop %v430
        %v433 = vlaneseq
        %v434 = vshrl.u32 %v433, 7
        %v435 = vsub.s32 0, %v434
        %v436 = vrot.slane %v431, %v435
        %v438 = vmul.f32 %v412, %v436
        %s439 = scalar_lea.vmem %s295, 3 [#allocation8]
        %v440 = vld [vmem:[%s439] ss:$4 sm:$0x3]
        %v441 = vmul.f32 %v440, %v440
        %v443 = vlaneseq
        %v444 = vshrl.u32 %v443, 7
        %v445 = vsub.s32 0, %v444
        %v446 = vrot.slane %v441, %v445
        %v447 = vlaneseq
        %v448 = vshrl.u32 %v447, 7
        %v449 = vsub.s32 1, %v448
        %v450 = vrot.slane %v441, %v449
        %v453 = vsel %vm368, %v446, 0.0
        %v454 = vsel %vm368, %v450, 0.0
        %v455 = vadd.f32 %v453, %v454
        %456 = vadd.xlane.f32.xlu0 %v455
        %v457 = vpop.xlane.xlu0 %456
        %v458 = vmax.f32 %v457, 1e-30
        %v459 = vrsqrt.pop %v458
        %v461 = vlaneseq
        %v462 = vshrl.u32 %v461, 7
        %v463 = vsub.s32 0, %v462
        %v464 = vrot.slane %v459, %v463
        %v466 = vmul.f32 %v440, %v464
        %v467 = vadd.f32 %v348, %v350
        %v468 = vadd.f32 %v467, %v352
        %v469 = vadd.f32 %v468, %v354
        %v470 = vmul.f32 %v382, 10.0
        %v471 = vadd.f32 %v341, %v470
        %v472 = vmul.f32 %v410, 10.0
        %v473 = vadd.f32 %v343, %v472
        %v474 = vmul.f32 %v438, 10.0
        %v475 = vadd.f32 %v345, %v474
        %v476 = vmul.f32 %v466, 10.0
        %v477 = vadd.f32 %v347, %v476
        %s478 = sld [smem:[#allocation9]]
        %v479 = vstv %s478
        %v480 = vmul.f32 %v471, %v479
        %s481 = sld [smem:[#allocation9 + $0x1]]
        %v482 = vstv %s481
        %v483 = vmul.f32 %v473, %v482
        %v484 = vadd.f32 %v480, %v483
        %s485 = sld [smem:[#allocation9 + $0x2]]
        %v486 = vstv %s485
        %v487 = vmul.f32 %v475, %v486
        %v488 = vadd.f32 %v484, %v487
        %s489 = sld [smem:[#allocation9 + $0x3]]
        %v490 = vstv %s489
        %v491 = vmul.f32 %v477, %v490
        %v492 = vadd.f32 %v488, %v491
        %s493 = sld [smem:[#allocation10]]
        %v494 = vstv %s493
        %v495 = vadd.f32 %v492, %v494
        %s496 = sld [smem:[#allocation9 + $0x80]]
        %v497 = vstv %s496
        %v498 = vmul.f32 %v471, %v497
        %s499 = sld [smem:[#allocation9 + $0x81]]
        %v500 = vstv %s499
        %v501 = vmul.f32 %v473, %v500
        %v502 = vadd.f32 %v498, %v501
        %s503 = sld [smem:[#allocation9 + $0x82]]
        %v504 = vstv %s503
        %v505 = vmul.f32 %v475, %v504
        %v506 = vadd.f32 %v502, %v505
        %s507 = sld [smem:[#allocation9 + $0x83]]
        %v508 = vstv %s507
        %v509 = vmul.f32 %v477, %v508
        %v510 = vadd.f32 %v506, %v509
        %s511 = sld [smem:[#allocation10 + $0x1]]
        %v512 = vstv %s511
        %v513 = vadd.f32 %v510, %v512
        %s514 = sld [smem:[#allocation9 + $0x100]]
        %v515 = vstv %s514
        %v516 = vmul.f32 %v471, %v515
        %s517 = sld [smem:[#allocation9 + $0x101]]
        %v518 = vstv %s517
        %v519 = vmul.f32 %v473, %v518
        %v520 = vadd.f32 %v516, %v519
        %s521 = sld [smem:[#allocation9 + $0x102]]
        %v522 = vstv %s521
        %v523 = vmul.f32 %v475, %v522
        %v524 = vadd.f32 %v520, %v523
        %s525 = sld [smem:[#allocation9 + $0x103]]
        %v526 = vstv %s525
        %v527 = vmul.f32 %v477, %v526
        %v528 = vadd.f32 %v524, %v527
        %s529 = sld [smem:[#allocation10 + $0x2]]
        %v530 = vstv %s529
        %v531 = vadd.f32 %v528, %v530
        %s532 = sld [smem:[#allocation9 + $0x180]]
        %v533 = vstv %s532
        %v534 = vmul.f32 %v471, %v533
        %s535 = sld [smem:[#allocation9 + $0x181]]
        %v536 = vstv %s535
        %v537 = vmul.f32 %v473, %v536
        %v538 = vadd.f32 %v534, %v537
        %s539 = sld [smem:[#allocation9 + $0x182]]
        %v540 = vstv %s539
        %v541 = vmul.f32 %v475, %v540
        %v542 = vadd.f32 %v538, %v541
        %s543 = sld [smem:[#allocation9 + $0x183]]
        %v544 = vstv %s543
        %v545 = vmul.f32 %v477, %v544
        %v546 = vadd.f32 %v542, %v545
        %s547 = sld [smem:[#allocation10 + $0x3]]
        %v548 = vstv %s547
        %v549 = vadd.f32 %v546, %v548
        %v550 = vmax.f32 %v495, %v513
        %v551 = vmax.f32 %v550, %v531
        %v552 = vmax.f32 %v551, %v549
        %v553 = vsub.f32 %v495, %v552
        %v554 = vmul.f32 %v553, 1.442695
        %v555 = vpow.pop %v554
        %v556 = vsub.f32 %v513, %v552
        %v557 = vmul.f32 %v556, 1.442695
        %v558 = vpow.pop %v557
        %v559 = vsub.f32 %v531, %v552
        %v560 = vmul.f32 %v559, 1.442695
        %v561 = vpow.pop %v560
        %v562 = vsub.f32 %v549, %v552
        %v563 = vmul.f32 %v562, 1.442695
        %v564 = vpow.pop %v563
        %v565 = vadd.f32 %v555, %v558
        %v566 = vadd.f32 %v565, %v561
        %v567 = vadd.f32 %v566, %v564
        %v568 = vrcp.pop %v567
        %v569 = vmul.f32 %v555, %v568
        %v570 = vmul.f32 %v569, %v469
        %v571 = vsub.f32 %v570, %v348
        %v572 = vmul.f32 %v558, %v568
        %v573 = vmul.f32 %v572, %v469
        %v574 = vsub.f32 %v573, %v350
        %v575 = vmul.f32 %v561, %v568
        %v576 = vmul.f32 %v575, %v469
        %v577 = vsub.f32 %v576, %v352
        %v578 = vmul.f32 %v564, %v568
        %v579 = vmul.f32 %v578, %v469
        %v580 = vsub.f32 %v579, %v354
        %v581 = vmul.f32 %v571, %v479
        %v582 = vmul.f32 %v574, %v497
        %v583 = vadd.f32 %v581, %v582
        %v584 = vmul.f32 %v577, %v515
        %v585 = vadd.f32 %v583, %v584
        %v586 = vmul.f32 %v580, %v533
        %v587 = vadd.f32 %v585, %v586
        %v588 = vmul.f32 %v587, %v587
        %v590 = vlaneseq
        %v591 = vshrl.u32 %v590, 7
        %v592 = vsub.s32 0, %v591
        %v593 = vrot.slane %v588, %v592
        %v594 = vlaneseq
        %v595 = vshrl.u32 %v594, 7
        %v596 = vsub.s32 1, %v595
        %v597 = vrot.slane %v588, %v596
        %v600 = vsel %vm368, %v593, 0.0
        %v601 = vsel %vm368, %v597, 0.0
        %v602 = vadd.f32 %v600, %v601
        %603 = vadd.xlane.f32.xlu0 %v602
        %v604 = vpop.xlane.xlu0 %603
        %v605 = vmax.f32 %v604, 1e-30
        %v606 = vrsqrt.pop %v605
        %v608 = vlaneseq
        %v609 = vshrl.u32 %v608, 7
        %v610 = vsub.s32 0, %v609
        %v611 = vrot.slane %v606, %v610
        %v613 = vmul.f32 %v587, %v611
        %v614 = vmul.f32 %v571, %v482
        %v615 = vmul.f32 %v574, %v500
        %v616 = vadd.f32 %v614, %v615
        %v617 = vmul.f32 %v577, %v518
        %v618 = vadd.f32 %v616, %v617
        %v619 = vmul.f32 %v580, %v536
        %v620 = vadd.f32 %v618, %v619
        %v621 = vmul.f32 %v620, %v620
        %v623 = vlaneseq
        %v624 = vshrl.u32 %v623, 7
        %v625 = vsub.s32 0, %v624
        %v626 = vrot.slane %v621, %v625
        %v627 = vlaneseq
        %v628 = vshrl.u32 %v627, 7
        %v629 = vsub.s32 1, %v628
        %v630 = vrot.slane %v621, %v629
        %v633 = vsel %vm368, %v626, 0.0
        %v634 = vsel %vm368, %v630, 0.0
        %v635 = vadd.f32 %v633, %v634
        %636 = vadd.xlane.f32.xlu0 %v635
        %v637 = vpop.xlane.xlu0 %636
        %v638 = vmax.f32 %v637, 1e-30
        %v639 = vrsqrt.pop %v638
        %v641 = vlaneseq
        %v642 = vshrl.u32 %v641, 7
        %v643 = vsub.s32 0, %v642
        %v644 = vrot.slane %v639, %v643
        %v646 = vmul.f32 %v620, %v644
        %v647 = vmul.f32 %v571, %v486
        %v648 = vmul.f32 %v574, %v504
        %v649 = vadd.f32 %v647, %v648
        %v650 = vmul.f32 %v577, %v522
        %v651 = vadd.f32 %v649, %v650
        %v652 = vmul.f32 %v580, %v540
        %v653 = vadd.f32 %v651, %v652
        %v654 = vmul.f32 %v653, %v653
        %v656 = vlaneseq
        %v657 = vshrl.u32 %v656, 7
        %v658 = vsub.s32 0, %v657
        %v659 = vrot.slane %v654, %v658
        %v660 = vlaneseq
        %v661 = vshrl.u32 %v660, 7
        %v662 = vsub.s32 1, %v661
        %v663 = vrot.slane %v654, %v662
        %v666 = vsel %vm368, %v659, 0.0
        %v667 = vsel %vm368, %v663, 0.0
        %v668 = vadd.f32 %v666, %v667
        %669 = vadd.xlane.f32.xlu0 %v668
        %v670 = vpop.xlane.xlu0 %669
        %v671 = vmax.f32 %v670, 1e-30
        %v672 = vrsqrt.pop %v671
        %v674 = vlaneseq
        %v675 = vshrl.u32 %v674, 7
        %v676 = vsub.s32 0, %v675
        %v677 = vrot.slane %v672, %v676
        %v679 = vmul.f32 %v653, %v677
        %v680 = vmul.f32 %v571, %v490
        %v681 = vmul.f32 %v574, %v508
        %v682 = vadd.f32 %v680, %v681
        %v683 = vmul.f32 %v577, %v526
        %v684 = vadd.f32 %v682, %v683
        %v685 = vmul.f32 %v580, %v544
        %v686 = vadd.f32 %v684, %v685
        %v687 = vmul.f32 %v686, %v686
        %v689 = vlaneseq
        %v690 = vshrl.u32 %v689, 7
        %v691 = vsub.s32 0, %v690
        %v692 = vrot.slane %v687, %v691
        %v693 = vlaneseq
        %v694 = vshrl.u32 %v693, 7
        %v695 = vsub.s32 1, %v694
        %v696 = vrot.slane %v687, %v695
        %v699 = vsel %vm368, %v692, 0.0
        %v700 = vsel %vm368, %v696, 0.0
        %v701 = vadd.f32 %v699, %v700
        %702 = vadd.xlane.f32.xlu0 %v701
        %v703 = vpop.xlane.xlu0 %702
        %v704 = vmax.f32 %v703, 1e-30
        %v705 = vrsqrt.pop %v704
        %v707 = vlaneseq
        %v708 = vshrl.u32 %v707, 7
        %v709 = vsub.s32 0, %v708
        %v710 = vrot.slane %v705, %v709
        %v712 = vmul.f32 %v686, %v710
        %v713 = vmul.f32 %v613, 10.0
        %v714 = vadd.f32 %v341, %v713
        %v715 = vmul.f32 %v646, 10.0
        %v716 = vadd.f32 %v343, %v715
        %v717 = vmul.f32 %v679, 10.0
        %v718 = vadd.f32 %v345, %v717
        %v719 = vmul.f32 %v712, 10.0
        %v720 = vadd.f32 %v347, %v719
        %v721 = vmul.f32 %v714, %v479
        %v722 = vmul.f32 %v716, %v482
        %v723 = vadd.f32 %v721, %v722
        %v724 = vmul.f32 %v718, %v486
        %v725 = vadd.f32 %v723, %v724
        %v726 = vmul.f32 %v720, %v490
        %v727 = vadd.f32 %v725, %v726
        %v728 = vadd.f32 %v727, %v494
        %v729 = vmul.f32 %v714, %v497
        %v730 = vmul.f32 %v716, %v500
        %v731 = vadd.f32 %v729, %v730
        %v732 = vmul.f32 %v718, %v504
        %v733 = vadd.f32 %v731, %v732
        %v734 = vmul.f32 %v720, %v508
        %v735 = vadd.f32 %v733, %v734
        %v736 = vadd.f32 %v735, %v512
        %v737 = vmul.f32 %v714, %v515
        %v738 = vmul.f32 %v716, %v518
        %v739 = vadd.f32 %v737, %v738
        %v740 = vmul.f32 %v718, %v522
        %v741 = vadd.f32 %v739, %v740
        %v742 = vmul.f32 %v720, %v526
        %v743 = vadd.f32 %v741, %v742
        %v744 = vadd.f32 %v743, %v530
        %v745 = vmul.f32 %v714, %v533
        %v746 = vmul.f32 %v716, %v536
        %v747 = vadd.f32 %v745, %v746
        %v748 = vmul.f32 %v718, %v540
        %v749 = vadd.f32 %v747, %v748
        %v750 = vmul.f32 %v720, %v544
        %v751 = vadd.f32 %v749, %v750
        %v752 = vadd.f32 %v751, %v548
        %v753 = vmax.f32 %v728, %v736
        %v754 = vmax.f32 %v753, %v744
        %v755 = vmax.f32 %v754, %v752
        %v756 = vsub.f32 %v728, %v755
        %v757 = vmul.f32 %v756, 1.442695
        %v758 = vpow.pop %v757
        %v759 = vsub.f32 %v736, %v755
        %v760 = vmul.f32 %v759, 1.442695
        %v761 = vpow.pop %v760
        %v762 = vsub.f32 %v744, %v755
        %v763 = vmul.f32 %v762, 1.442695
        %v764 = vpow.pop %v763
        %v765 = vsub.f32 %v752, %v755
        %v766 = vmul.f32 %v765, 1.442695
        %v767 = vpow.pop %v766
        %v768 = vadd.f32 %v758, %v761
        %v769 = vadd.f32 %v768, %v764
        %v770 = vadd.f32 %v769, %v767
        %v771 = vrcp.pop %v770
        %v772 = vmul.f32 %v758, %v771
        %v773 = vmul.f32 %v772, %v469
        %v774 = vsub.f32 %v773, %v348
        %v775 = vmul.f32 %v761, %v771
        %v776 = vmul.f32 %v775, %v469
        %v777 = vsub.f32 %v776, %v350
        %v778 = vmul.f32 %v764, %v771
        %v779 = vmul.f32 %v778, %v469
        %v780 = vsub.f32 %v779, %v352
        %v781 = vmul.f32 %v767, %v771
        %v782 = vmul.f32 %v781, %v469
        %v783 = vsub.f32 %v782, %v354
        %v784 = vmul.f32 %v774, %v479
        %v785 = vmul.f32 %v777, %v497
        %v786 = vadd.f32 %v784, %v785
        %v787 = vmul.f32 %v780, %v515
        %v788 = vadd.f32 %v786, %v787
        %v789 = vmul.f32 %v783, %v533
        %v790 = vadd.f32 %v788, %v789
        %v791 = vmul.f32 %v790, %v790
        %v793 = vlaneseq
        %v794 = vshrl.u32 %v793, 7
        %v795 = vsub.s32 0, %v794
        %v796 = vrot.slane %v791, %v795
        %v797 = vlaneseq
        %v798 = vshrl.u32 %v797, 7
        %v799 = vsub.s32 1, %v798
        %v800 = vrot.slane %v791, %v799
        %v803 = vsel %vm368, %v796, 0.0
        %v804 = vsel %vm368, %v800, 0.0
        %v805 = vadd.f32 %v803, %v804
        %806 = vadd.xlane.f32.xlu0 %v805
        %v807 = vpop.xlane.xlu0 %806
        %v808 = vmax.f32 %v807, 1e-30
        %v809 = vrsqrt.pop %v808
        %v811 = vlaneseq
        %v812 = vshrl.u32 %v811, 7
        %v813 = vsub.s32 0, %v812
        %v814 = vrot.slane %v809, %v813
        %v816 = vmul.f32 %v790, %v814
        %v817 = vmul.f32 %v774, %v482
        %v818 = vmul.f32 %v777, %v500
        %v819 = vadd.f32 %v817, %v818
        %v820 = vmul.f32 %v780, %v518
        %v821 = vadd.f32 %v819, %v820
        %v822 = vmul.f32 %v783, %v536
        %v823 = vadd.f32 %v821, %v822
        %v824 = vmul.f32 %v823, %v823
        %v826 = vlaneseq
        %v827 = vshrl.u32 %v826, 7
        %v828 = vsub.s32 0, %v827
        %v829 = vrot.slane %v824, %v828
        %v830 = vlaneseq
        %v831 = vshrl.u32 %v830, 7
        %v832 = vsub.s32 1, %v831
        %v833 = vrot.slane %v824, %v832
        %v836 = vsel %vm368, %v829, 0.0
        %v837 = vsel %vm368, %v833, 0.0
        %v838 = vadd.f32 %v836, %v837
        %839 = vadd.xlane.f32.xlu0 %v838
        %v840 = vpop.xlane.xlu0 %839
        %v841 = vmax.f32 %v840, 1e-30
        %v842 = vrsqrt.pop %v841
        %v844 = vlaneseq
        %v845 = vshrl.u32 %v844, 7
        %v846 = vsub.s32 0, %v845
        %v847 = vrot.slane %v842, %v846
        %v849 = vmul.f32 %v823, %v847
        %v850 = vmul.f32 %v774, %v486
        %v851 = vmul.f32 %v777, %v504
        %v852 = vadd.f32 %v850, %v851
        %v853 = vmul.f32 %v780, %v522
        %v854 = vadd.f32 %v852, %v853
        %v855 = vmul.f32 %v783, %v540
        %v856 = vadd.f32 %v854, %v855
        %v857 = vmul.f32 %v856, %v856
        %v859 = vlaneseq
        %v860 = vshrl.u32 %v859, 7
        %v861 = vsub.s32 0, %v860
        %v862 = vrot.slane %v857, %v861
        %v863 = vlaneseq
        %v864 = vshrl.u32 %v863, 7
        %v865 = vsub.s32 1, %v864
        %v866 = vrot.slane %v857, %v865
        %v869 = vsel %vm368, %v862, 0.0
        %v870 = vsel %vm368, %v866, 0.0
        %v871 = vadd.f32 %v869, %v870
        %872 = vadd.xlane.f32.xlu0 %v871
        %v873 = vpop.xlane.xlu0 %872
        %v874 = vmax.f32 %v873, 1e-30
        %v875 = vrsqrt.pop %v874
        %v877 = vlaneseq
        %v878 = vshrl.u32 %v877, 7
        %v879 = vsub.s32 0, %v878
        %v880 = vrot.slane %v875, %v879
        %v882 = vmul.f32 %v856, %v880
        %v883 = vmul.f32 %v774, %v490
        %v884 = vmul.f32 %v777, %v508
        %v885 = vadd.f32 %v883, %v884
        %v886 = vmul.f32 %v780, %v526
        %v887 = vadd.f32 %v885, %v886
        %v888 = vmul.f32 %v783, %v544
        %v889 = vadd.f32 %v887, %v888
        %v890 = vmul.f32 %v889, %v889
        %v892 = vlaneseq
        %v893 = vshrl.u32 %v892, 7
        %v894 = vsub.s32 0, %v893
        %v895 = vrot.slane %v890, %v894
        %v896 = vlaneseq
        %v897 = vshrl.u32 %v896, 7
        %v898 = vsub.s32 1, %v897
        %v899 = vrot.slane %v890, %v898
        %v902 = vsel %vm368, %v895, 0.0
        %v903 = vsel %vm368, %v899, 0.0
        %v904 = vadd.f32 %v902, %v903
        %905 = vadd.xlane.f32.xlu0 %v904
        %v906 = vpop.xlane.xlu0 %905
        %v907 = vmax.f32 %v906, 1e-30
        %v908 = vrsqrt.pop %v907
        %v910 = vlaneseq
        %v911 = vshrl.u32 %v910, 7
        %v912 = vsub.s32 0, %v911
        %v913 = vrot.slane %v908, %v912
        %v915 = vmul.f32 %v889, %v913
        %v916 = vadd.f32 %v341, %v816
        %v917 = vlaneseq
        %vm918 = vcmp.ge.s32.totalorder %v917, 0
        %vm919 = vcmp.lt.s32.totalorder %v917, 256
        %vm920 = vmand %vm918, %vm919
        %921 = vst.msk [vmem:[%s340] ss:$4 sm:$0x3] %vm920, %v916
        %v922 = vadd.f32 %v343, %v849
        %s923 = scalar_lea.vmem %s340, 1 [#allocation12]
        %924 = vst.msk [vmem:[%s923] ss:$4 sm:$0x3] %vm920, %v922
        %v925 = vadd.f32 %v345, %v882
        %s926 = scalar_lea.vmem %s340, 2 [#allocation12]
        %927 = vst.msk [vmem:[%s926] ss:$4 sm:$0x3] %vm920, %v925
        %v928 = vadd.f32 %v347, %v915
        %s929 = scalar_lea.vmem %s340, 3 [#allocation12]
        %930 = vst.msk [vmem:[%s929] ss:$4 sm:$0x3] %vm920, %v928
        %s931 = sand.u32 %s155, 1
        %s932 = scalar_lea.sflag [#allocation4], %s931
        %s933 = sand.u32 %s155, 1
        %s934 = smul.addr %s933, 8
        %s935 = scalar_lea.vmem [#allocation12], %s934
        // Predicated region
        $region61: #{tpu_custom_call.1} parent=39 // pred_check
          %p936 = pneg %p165
        $region62: #{tpu_custom_call.1} parent=39 // pred_check_branch
          %938 = sbr.rel (%p936) target = $region64
        $region63: #{tpu_custom_call.1} parent=39 // pred_region
          %s940 = ssub.s32 128, 128
          %941 = vsyncadd %s932, %s940
          %s942 = smul.addr %s27, 2
          %s943 = smul.addr %s942, 64
          %s944 = scalar_lea.hbm %s5, %s943
          %s946 = sshll.u32 %s935, 4
          %s947 = int_to_ptr.vmem [resolvable:$true] %s946
          %949 = dma.vmem_to_hbm [thread:$0]  %s947, 128, %s944, %s932
        $region64: #{tpu_custom_call.1} parent=39 // pred_fallthru
          _
      $region40: #{tpu_custom_call.1} parent=5 // pred_fallthru
        _
      %p950 = scmp.le.s32.totalorder 2, %s22
      // Predicated region
      $region65: #{tpu_custom_call.1} parent=5 // pred_check
        %p951 = pneg %p950
      $region66: #{tpu_custom_call.1} parent=5 // pred_check_branch
        %953 = sbr.rel (%p951) target = $region68
      $region67: #{tpu_custom_call.1} parent=5 // pred_region
        %s954 = ssub.s32 %s22, 2
        // Predicated region
        $region69: #{tpu_custom_call.1} parent=67 // pred_check
          %p955 = pneg %p171
        $region70: #{tpu_custom_call.1} parent=67 // pred_check_branch
          %957 = sbr.rel (%p955) target = $region72
        $region71: #{tpu_custom_call.1} parent=67 // pred_region
          %s958 = sand.u32 %s156, 1
          %s959 = scalar_lea.sflag [#allocation4], %s958
          %s960 = sand.u32 %s156, 1
          %s961 = smul.addr %s960, 8
          %s962 = scalar_lea.vmem [#allocation12], %s961
          %963 = dma.done %s959, 128
        $region72: #{tpu_custom_call.1} parent=67 // pred_fallthru
          _
      $region68: #{tpu_custom_call.1} parent=5 // pred_fallthru
        _
    $region6: #{tpu_custom_call.1} parent=1 // loop_footer
      %s26 = sadd.s32 1, %s22
    $region7: #{tpu_custom_call.1} parent=1 // loop_footer_branch
      %21 = sbr.rel target = $region3
    $region8: #{tpu_custom_call.1} parent=1 // loop_exit
      _
    %964 = vsyncpa [#allocation3], 1
    %s965 = scalar_lea.sflag [#allocation3], 1
    %966 = vsyncpa %s965, 1
    %967 = vsyncpa [#allocation7], 1
    %s968 = scalar_lea.sflag [#allocation7], 1
    %969 = vsyncpa %s968, 1
    %970 = vsyncpa [#allocation4], 1
    %s971 = scalar_lea.sflag [#allocation4], 1
    %972 = vsyncpa %s971, 1
    %973 = vsyncpa [#allocation5], 1
    %s974 = scalar_lea.sflag [#allocation5], 1
    %975 = vsyncpa %s974, 1
    %976 = vsyncpa [#allocation11], 1

</llo_original>
